<compile_context>
chip_gen: v6e
topology: v6e:2x2x1
jax: 0.10.0
libtpu: 0.0.40
codegen_flags: <defaults>
</compile_context>

<pallas_src>
import functools

import numpy as np
import jax
import jax.numpy as jnp
from jax import lax
from jax.experimental import pallas as pl
from jax.experimental.pallas import tpu as pltpu


# --------------------------------------------------------------------------
# Generation-aware VMEM budget + small helpers
# --------------------------------------------------------------------------

def _vmem_limit_bytes():
    try:
        cap = int(pltpu.get_tpu_info().vmem_capacity_bytes)
    except Exception:
        cap = 64 * 1024 * 1024
    # ~75% of physical, capped: 48 MiB on v7x (64 MiB phys), 96 MiB on v5e/v6e.
    return max(32 * 1024 * 1024, min(cap * 3 // 4, 96 * 1024 * 1024))


_VMEM_LIMIT = _vmem_limit_bytes()


def _mosaic(dims):
    return pltpu.CompilerParams(dimension_semantics=dims,
                                vmem_limit_bytes=_VMEM_LIMIT)


def _pad_last_to(x, multiple):
    L = x.shape[-1]
    Lp = ((L + multiple - 1) // multiple) * multiple
    if Lp != L:
        pad = [(0, 0)] * (x.ndim - 1) + [(0, Lp - L)]
        x = jnp.pad(x, pad)
    return x, Lp


def _pick_tile(L, candidates):
    for t in candidates:
        if t <= L and L % t == 0:
            return t
    return candidates[-1]


# --------------------------------------------------------------------------
# Resize (utils.resize_video, scale_factor=0.5)
# --------------------------------------------------------------------------

def _col_pool_matrix(W, mode):
    Wo = W // 2
    r = np.arange(W)[:, None]
    c = np.arange(Wo)[None, :]
    if mode == "bilinear":
        m = ((r == 2 * c) | (r == 2 * c + 1)).astype(np.float32) * 0.5
    else:
        m = (r == 2 * c).astype(np.float32)
    return jnp.asarray(m)


def _resize_half_kernel(x_ref, cmat_ref, o_ref, *, rb, mode):
    """Row pooling with stride-2 sublane loads + VPU adds; column pooling with
    one small hoisted (W, W//2) pooling matrix on the MXU."""
    even = x_ref[pl.ds(0, rb // 2, 2), :]
    if mode == "bilinear":
        odd = x_ref[pl.ds(1, rb // 2, 2), :]
        pooled = (even + odd) * 0.5
    else:                                   # nearest: top-left of each 2x2 block
        pooled = even
    o_ref[...] = jnp.dot(pooled, cmat_ref[...], preferred_element_type=jnp.float32)


def resize_group_half(x, mode):
    """utils.resize_video(scale_factor=0.5) on a whole [B, C, T, H, W] group."""
    B, C, T, H, W = x.shape
    planes = B * C * T
    M = planes * H
    x2 = x.reshape(M, W).astype(jnp.float32)
    # planes processed per grid step, sized from the scoped-VMEM budget
    budget = max(_VMEM_LIMIT // 8, 1 << 20)
    pc = 1
    for cand in (64, 32, 16, 8, 4, 2, 1):
        if planes % cand == 0 and cand * H * W * 4 <= budget:
            pc = cand
            break
    rb = pc * H
    cmat = _col_pool_matrix(W, mode)
    # TODO(synk): when W//2 < 128 the output store is lane-masked; at production
    #             resolutions (W >= 256) the store is already lane-dense.
    out = pl.pallas_call(
        functools.partial(_resize_half_kernel, rb=rb, mode=mode),
        out_shape=jax.ShapeDtypeStruct((M // 2, W // 2), jnp.float32),
        grid=(M // rb,),
        in_specs=[pl.BlockSpec((rb, W), lambda i: (i, 0)),
                  pl.BlockSpec((W, W // 2), lambda i: (0, 0))],
        out_specs=pl.BlockSpec((rb // 2, W // 2), lambda i: (i, 0)),
        compiler_params=_mosaic(("parallel",)),
    )(x2, cmat)
    return out.reshape(B, C, T, H // 2, W // 2)


# --------------------------------------------------------------------------
# Fused appearance encoder + 4 motion heads (one kernel, chained matmuls)
# --------------------------------------------------------------------------

def _app_motion_kernel(x_ref, wa_ref, ba_ref, wh_ref, bh_ref, o_ref, *, tp, flow_scale):
    # y1 = relu(W_app @ x + b);  heads = act(W_heads @ y1 + b)
    y1 = jnp.dot(wa_ref[...], x_ref[0], preferred_element_type=jnp.float32) + ba_ref[...]
    y1 = jnp.maximum(y1, 0.0)
    y2 = (jnp.dot(wh_ref[...], y1.astype(jnp.bfloat16),
                  preferred_element_type=jnp.float32) + bh_ref[...])
    nf = 4 * tp                                  # rows [0,4tp) = flows, rest = occlusions
    o_ref[0, 0:nf, :] = flow_scale * jnp.tanh(y2[0:nf, :])
    o_ref[0, nf:, :] = jax.nn.sigmoid(y2[nf:, :])


def fused_appearance_motion(params, input_frames, tp, flow_scale=3.0):
    """input_frames [B, Cin, H, W] -> heads [B, 6*tp, H*W] with row layout
    [dense_flow(2tp: x_t.., y_t..), sparse_flow(2tp), dense_occ(tp), sparse_occ(tp)].
    No transposes: NCHW is read directly over an (N, Cin, HW) view."""
    B, Cin, H, W = input_frames.shape
    HW = H * W
    c_feat = params["app_w"].shape[0]
    w_heads = jnp.concatenate([params["dense_w"], params["sparse_w"],
                               params["occ_w"], params["socc_w"]], axis=0)
    b_heads = jnp.concatenate([params["dense_b"], params["sparse_b"],
                               params["occ_b"], params["socc_b"]], axis=0)
    co = w_heads.shape[0]                        # 6 * tp
    x = input_frames.reshape(B, Cin, HW).astype(jnp.bfloat16)
    x, HWp = _pad_last_to(x, 128)
    tile = _pick_tile(HWp, (8192, 4096, 2048, 1024, 512, 256, 128))
    heads = pl.pallas_call(
        functools.partial(_app_motion_kernel, tp=tp, flow_scale=flow_scale),
        out_shape=jax.ShapeDtypeStruct((B, co, HWp), jnp.float32),
        grid=(B, HWp // tile),
        in_specs=[pl.BlockSpec((1, Cin, tile), lambda n, j: (n, 0, j)),
                  pl.BlockSpec((c_feat, Cin), lambda n, j: (0, 0)),
                  pl.BlockSpec((c_feat, 1), lambda n, j: (0, 0)),
                  pl.BlockSpec((co, c_feat), lambda n, j: (0, 0)),
                  pl.BlockSpec((co, 1), lambda n, j: (0, 0))],
        out_specs=pl.BlockSpec((1, co, tile), lambda n, j: (n, 0, j)),
        compiler_params=_mosaic(("parallel", "parallel")),
    )(x, params["app_w"].astype(jnp.bfloat16), params["app_b"],
      w_heads.astype(jnp.bfloat16), b_heads)
    if HWp != HW:
        heads = heads[:, :, :HW]
    return heads


# --------------------------------------------------------------------------
# Backward bilinear warp (utils.resample): dense + sparse + occlusion fused
# --------------------------------------------------------------------------

def _warp_kernel(frame_ref, heads_ref, gen_ref, gsp_ref, gso_ref, *, C, H, W, tp):
    """Row/column factored warp.  For each output tile: build column-mix weights
    for both flows' lo/hi rows, contract over W with one wide MXU dot, mask and
    reduce rows on the VPU/XLU.  Border-clamped sampling."""
    t = pl.program_id(1)
    j = pl.program_id(2)
    tile = heads_ref.shape[-1]
    frame = frame_ref[0]                                  # (C*H, W) bf16

    fx_d = heads_ref[0, pl.ds(t, 1), :]                   # dense flow x, (1, tile)
    fy_d = heads_ref[0, pl.ds(tp + t, 1), :]
    fx_s = heads_ref[0, pl.ds(2 * tp + t, 1), :]          # sparse flow x
    fy_s = heads_ref[0, pl.ds(3 * tp + t, 1), :]
    occ_d = heads_ref[0, pl.ds(4 * tp + t, 1), :]
    occ_s = heads_ref[0, pl.ds(5 * tp + t, 1), :]

    p = lax.broadcasted_iota(jnp.int32, (1, tile), 1) + j * tile
    xx = (p % W).astype(jnp.float32)
    yy = (p // W).astype(jnp.float32)

    def corners(fx, fy):
        sx = xx + fx
        sy = yy + fy
        x0f = jnp.floor(sx)
        y0f = jnp.floor(sy)
        wx = sx - x0f
        wy = sy - y0f
        x0 = jnp.clip(x0f.astype(jnp.int32), 0, W - 1)
        x1 = jnp.clip(x0f.astype(jnp.int32) + 1, 0, W - 1)
        y0 = jnp.clip(y0f.astype(jnp.int32), 0, H - 1)
        y1 = jnp.clip(y0f.astype(jnp.int32) + 1, 0, H - 1)
        return x0, x1, y0, y1, wx, wy

    xd0, xd1, yd0, yd1, wxd, wyd = corners(fx_d, fy_d)
    xs0, xs1, ys0, ys1, wxs, wys = corners(fx_s, fy_s)

    wi = lax.broadcasted_iota(jnp.int32, (W, tile), 0)

    def colmix(x0, x1, wx, wy):
        lo = (jnp.where(wi == x0, (1.0 - wx) * (1.0 - wy), 0.0)
              + jnp.where(wi == x1, wx * (1.0 - wy), 0.0))
        hi = (jnp.where(wi == x0, (1.0 - wx) * wy, 0.0)
              + jnp.where(wi == x1, wx * wy, 0.0))
        return lo.astype(jnp.bfloat16), hi.astype(jnp.bfloat16)

    dlo, dhi = colmix(xd0, xd1, wxd, wyd)
    slo, shi = colmix(xs0, xs1, wxs, wys)
    colw = jnp.concatenate([dlo, dhi, slo, shi], axis=1)          # (W, 4*tile) bf16
    g = jnp.dot(frame, colw, preferred_element_type=jnp.float32)  # (C*H, 4*tile)

    hi_iota = lax.broadcasted_iota(jnp.int32, (H, tile), 0)
    rmask = jnp.concatenate(
        [jnp.where(hi_iota == yd0, 1.0, 0.0),
         jnp.where(hi_iota == yd1, 1.0, 0.0),
         jnp.where(hi_iota == ys0, 1.0, 0.0),
         jnp.where(hi_iota == ys1, 1.0, 0.0)], axis=1)            # (H, 4*tile)

    for c in range(C):
        red = jnp.sum(g[c * H:(c + 1) * H, :] * rmask, axis=0, keepdims=True)  # (1, 4*tile)
        d = red[:, 0:tile] + red[:, tile:2 * tile]                # dense warp
        s = red[:, 2 * tile:3 * tile] + red[:, 3 * tile:4 * tile]  # sparse warp
        gen_ref[0, 0, c:c + 1, :] = d * occ_d                     # occlusion fused
        gsp_ref[0, 0, c:c + 1, :] = s
        gso_ref[0, 0, c:c + 1, :] = s * occ_s


def warp_with_heads(frame, heads, tp):
    """frame [B,C,H,W]; heads [B,6*tp,H*W] (pixel-unit flows + occlusions).
    Returns t-major (tp, B, C, H*W) tensors:
       generated         = warp(frame, dense_flow)  * dense_occ
       warped_sparse     = warp(frame, sparse_flow)
       warped_sparse_occ = warp(frame, sparse_flow) * sparse_occ
    The frame is NOT replicated; it stays VMEM-resident across (t, j)."""
    B, C, H, W = frame.shape
    HW = H * W
    fr = frame.reshape(B, C * H, W).astype(jnp.bfloat16)
    hd, HWp = _pad_last_to(heads, 128)
    # largest output-pixel tile whose per-step intermediates fit the VMEM budget
    tile = 128
    for cand in (512, 256, 128):
        if HWp % cand == 0:
            est = 4 * cand * (C * H * 4 + W * 2 + H * 4) + C * H * W * 2 * 2
            if est * 4 < _VMEM_LIMIT:
                tile = cand
                break
    outs = pl.pallas_call(
        functools.partial(_warp_kernel, C=C, H=H, W=W, tp=tp),
        out_shape=(jax.ShapeDtypeStruct((tp, B, C, HWp), jnp.float32),) * 3,
        grid=(B, tp, HWp // tile),
        in_specs=[pl.BlockSpec((1, C * H, W), lambda b, t, j: (b, 0, 0)),
                  pl.BlockSpec((1, 6 * tp, tile), lambda b, t, j: (b, 0, j))],
        out_specs=(pl.BlockSpec((1, 1, C, tile), lambda b, t, j: (t, b, 0, j)),) * 3,
        compiler_params=_mosaic(("parallel", "arbitrary", "arbitrary")),
    )(fr, hd)
    if HWp != HW:
        outs = tuple(o[..., :HW] for o in outs)
    return outs


# --------------------------------------------------------------------------
# Fused 2-layer PatchGAN discriminator + LSGAN / feature-matching / rec-L1
# --------------------------------------------------------------------------

def _disc_loss_kernel(gt_ref, fk_ref, w1_ref, b1_ref, w2_ref, b2_ref,
                      stats_ref, acc_ref, *, hw):
    j = pl.program_id(1)

    @pl.when(j == 0)
    def _():
        acc_ref[...] = jnp.zeros_like(acc_ref)

    gt = gt_ref[0]                                 # (Cin, tile) f32
    fk = fk_ref[0]
    tile = gt_ref.shape[-1]
    col = lax.broadcasted_iota(jnp.int32, (1, tile), 1) + j * tile
    valid = (col < hw).astype(jnp.float32)         # masks lane padding

    fr = jnp.maximum(jnp.dot(w1_ref[...], gt.astype(jnp.bfloat16),
                             preferred_element_type=jnp.float32) + b1_ref[...], 0.0)
    ff = jnp.maximum(jnp.dot(w1_ref[...], fk.astype(jnp.bfloat16),
                             preferred_element_type=jnp.float32) + b1_ref[...], 0.0)
    pr = (jnp.dot(w2_ref[...], fr.astype(jnp.bfloat16),
                  preferred_element_type=jnp.float32) + b2_ref[...])
    pf = (jnp.dot(w2_ref[...], ff.astype(jnp.bfloat16),
                  preferred_element_type=jnp.float32) + b2_ref[...])

    # TODO(synk): gradient routing (fake.detach() for the D loss, feat.detach()
    #             for feature matching) is a stop_gradient concern at the loss
    #             level; forward values are identical.
    fm = jnp.sum(jnp.abs(fr - ff) * valid)         # feature-matching L1 sum
    dr = jnp.sum(((pr - 1.0) ** 2) * valid)        # LSGAN D(real) vs 1
    df = jnp.sum((pf ** 2) * valid)                # LSGAN D(fake) vs 0
    gg = jnp.sum(((pf - 1.0) ** 2) * valid)        # G adversarial
    rc = jnp.sum(jnp.abs(gt - fk) * valid)         # reconstruction L1 sum

    lane = lax.broadcasted_iota(jnp.int32, (1, 128), 1)
    acc_ref[...] += (jnp.where(lane == 0, fm, 0.0) + jnp.where(lane == 1, dr, 0.0)
                     + jnp.where(lane == 2, df, 0.0) + jnp.where(lane == 3, gg, 0.0)
                     + jnp.where(lane == 4, rc, 0.0))

    @pl.when(j == pl.num_programs(1) - 1)
    def _():
        stats_ref[...] = acc_ref[...]


def discriminator_losses(params, gt2, fk2):
    """gt2, fk2: (nb, Cin, HW) f32.  One fused pass: conv1+relu+conv2 for real
    and fake plus all loss reductions accumulated in VMEM (no feat / pred HBM
    writeback)."""
    # TODO(synk): multi-scale PatchGAN (discriminator.define_d); fused 2-layer
    #             pointwise PatchGAN stand-in here.
    nb, Cin, HW = gt2.shape
    ndf = params["d_w1"].shape[0]
    gt2, HWp = _pad_last_to(gt2, 128)
    fk2, _ = _pad_last_to(fk2, 128)
    tile = _pick_tile(HWp, (8192, 4096, 2048, 1024, 512, 256, 128))
    stats = pl.pallas_call(
        functools.partial(_disc_loss_kernel, hw=HW),
        out_shape=jax.ShapeDtypeStruct((nb, 128), jnp.float32),
        grid=(nb, HWp // tile),
        in_specs=[pl.BlockSpec((1, Cin, tile), lambda n, j: (n, 0, j)),
                  pl.BlockSpec((1, Cin, tile), lambda n, j: (n, 0, j)),
                  pl.BlockSpec((ndf, Cin), lambda n, j: (0, 0)),
                  pl.BlockSpec((ndf, 1), lambda n, j: (0, 0)),
                  pl.BlockSpec((1, ndf), lambda n, j: (0, 0)),
                  pl.BlockSpec((1, 1), lambda n, j: (0, 0))],
        out_specs=pl.BlockSpec((1, 128), lambda n, j: (n, 0)),
        scratch_shapes=[pltpu.VMEM((1, 128), jnp.float32)],
        compiler_params=_mosaic(("parallel", "arbitrary")),
    )(gt2, fk2, params["d_w1"].astype(jnp.bfloat16), params["d_b1"],
      params["d_w2"].astype(jnp.bfloat16), params["d_b2"])
    s = jnp.sum(stats, axis=0)
    denom_px = float(nb * HW)
    return {
        "fm": s[0] / (denom_px * ndf),
        "d_real": s[1] / denom_px,
        "d_fake": s[2] / denom_px,
        "g_gan": s[3] / denom_px,
        "rec_l1": s[4] / (denom_px * Cin),
    }


# --------------------------------------------------------------------------
# Gridded L1-mean reduction (torch.abs(a-b).mean())
# --------------------------------------------------------------------------

def _l1_sum_kernel(a_ref, b_ref, o_ref, acc_ref):
    i = pl.program_id(0)

    @pl.when(i == 0)
    def _():
        acc_ref[...] = jnp.zeros_like(acc_ref)

    acc_ref[...] += jnp.sum(jnp.abs(a_ref[...] - b_ref[...]), axis=0, keepdims=True)

    @pl.when(i == pl.num_programs(0) - 1)
    def _():
        o_ref[...] = acc_ref[...]


def _to_rows128(x):
    f = x.reshape(-1).astype(jnp.float32)
    n = f.shape[0]
    pad = (-n) % (8 * 128)
    if pad:
        f = jnp.concatenate([f, jnp.zeros((pad,), jnp.float32)])
    return f.reshape(-1, 128)


def l1_mean(a, b):
    """Gridded L1 mean with a lane-partial VMEM accumulator (works at any size)."""
    count = float(int(np.prod(a.shape)))
    a2 = _to_rows128(a)
    b2 = _to_rows128(b)
    R = a2.shape[0]
    rb = _pick_tile(R, (1024, 512, 256, 128, 64, 32, 16, 8))
    out = pl.pallas_call(
        _l1_sum_kernel,
        out_shape=jax.ShapeDtypeStruct((1, 128), jnp.float32),
        grid=(R // rb,),
        in_specs=[pl.BlockSpec((rb, 128), lambda i: (i, 0)),
                  pl.BlockSpec((rb, 128), lambda i: (i, 0))],
        out_specs=pl.BlockSpec((1, 128), lambda i: (0, 0)),
        scratch_shapes=[pltpu.VMEM((1, 128), jnp.float32)],
        compiler_params=_mosaic(("arbitrary",)),
    )(a2, b2)
    return jnp.sum(out) / count


# --------------------------------------------------------------------------
# Deterministic parameters (synthetic; no checkpoint loading)
# --------------------------------------------------------------------------

def init_params(model_params, train_params, key):
    ni = train_params["num_input_frames"]
    tp = train_params["num_predicted_frames"]
    ic = model_params["common_params"]["image_channel"]
    # frames(ic) + seg(bg,fg)=2 + instance(1) + flow(2) + occ(1), per input frame
    c_in_app = ni * (ic + 2 + 1 + 2 + 1)
    c_feat = 32
    ndf = model_params["discriminator"]["ndf"]
    d_in = model_params["discriminator"]["in_channel"]
    keys = jax.random.split(key, 8)

    def w(k, co, ci):
        return (jax.random.normal(k, (co, ci), jnp.float32) / np.sqrt(ci)).astype(jnp.float32)

    return {
        "app_w": w(keys[0], c_feat, c_in_app), "app_b": jnp.zeros((c_feat, 1), jnp.float32),
        "dense_w": w(keys[1], 2 * tp, c_feat), "dense_b": jnp.zeros((2 * tp, 1), jnp.float32),
        "sparse_w": w(keys[2], 2 * tp, c_feat), "sparse_b": jnp.zeros((2 * tp, 1), jnp.float32),
        "occ_w": w(keys[3], tp, c_feat), "occ_b": jnp.zeros((tp, 1), jnp.float32),
        "socc_w": w(keys[4], tp, c_feat), "socc_b": jnp.zeros((tp, 1), jnp.float32),
        "d_w1": w(keys[5], ndf, d_in), "d_b1": jnp.zeros((ndf, 1), jnp.float32),
        "d_w2": w(keys[6], 1, ndf), "d_b2": jnp.zeros((1, 1), jnp.float32),
    }


# --------------------------------------------------------------------------
# GeneratorFullModel.forward
# --------------------------------------------------------------------------

def generator_full_model_forward(params, data_batch, train_params, model_params, latent_key):
    ni = train_params["num_input_frames"]
    tp = train_params["num_predicted_frames"]
    output_dict = {}

    # ---- all ten utils.resize_video calls batched into TWO pallas_calls ----
    bi_group = jnp.concatenate([
        data_batch["video"],          # 3 channels
        data_batch["input_of"],       # 2
        data_batch["input_occ"],      # 1
        data_batch["target_bw_of"],   # 2
        data_batch["target_bw_occ"],  # 1
        data_batch["target_fw_of"],   # 2
        data_batch["target_fw_occ"],  # 1
    ], axis=1)
    ne_group = jnp.concatenate([
        data_batch["bg_mask"], data_batch["fg_mask"],
        data_batch["instance_mask"].astype(jnp.float32),
    ], axis=1)
    bi_small = resize_group_half(bi_group, mode="bilinear")
    ne_small = resize_group_half(ne_group, mode="nearest")

    frames = bi_small[:, 0:3]
    input_of = bi_small[:, 3:5] * 0.5        # is_flow: vectors shrink with resolution
    input_occ = bi_small[:, 5:6]
    target_bw_of = bi_small[:, 6:8] * 0.5
    target_bw_occ = bi_small[:, 8:9]
    target_fw_of = bi_small[:, 9:11] * 0.5
    target_fw_occ = bi_small[:, 11:12]
    del target_fw_of, target_fw_occ  # consumed only by the full TrainingLosses (stubbed)
    bg_mask = ne_small[:, 0:1]
    fg_mask = ne_small[:, 1:2]
    instance = ne_small[:, 2:3].astype(jnp.int32)

    source_full_seg_mask = jnp.concatenate([bg_mask[:, :, :ni], fg_mask[:, :, :ni]], axis=1)

    z_dim = model_params["motion_estimator"]["sparse_motion_estimator"]["z_dim"]
    latent_traj = jax.random.normal(
        latent_key, (data_batch["tracking_gnn"]["x"].shape[0], tp, z_dim), jnp.float32)
    del latent_traj  # TODO(synk): GNN sparse_motion_estimator not available (stand-in heads)

    def unbind_cat_c(x):   # torch.cat(torch.unbind(x, dim=2), dim=1)
        return jnp.concatenate([x[:, :, t] for t in range(x.shape[2])], axis=1)

    def unbind_cat_b(x):   # torch.cat(torch.unbind(x, dim=2), dim=0) -> t-major
        return jnp.concatenate([x[:, :, t] for t in range(x.shape[2])], axis=0)

    input_frames = jnp.concatenate([
        unbind_cat_c(frames[:, :, :ni]),
        unbind_cat_c(source_full_seg_mask),
        unbind_cat_c(instance[:, :, :ni].astype(jnp.float32)),
        unbind_cat_c(input_of[:, :, :ni]),
        unbind_cat_c(input_occ[:, :, :ni]),
    ], axis=1)

    B, C, _, Hh, Wh = frames.shape
    HW = Hh * Wh

    # ---- appearance encoder + all four motion heads: ONE fused kernel ----
    # TODO(synk): real AppearanceEncoder / DenseMotionNetwork are multi-layer
    #             conv / GNN nets; stand-in is a fused 2-stage pointwise net.
    heads = fused_appearance_motion(params, input_frames, tp)      # (B, 6tp, HW)

    dense = heads[:, 0:2 * tp].reshape(B, 2, tp, Hh, Wh)
    sparse = heads[:, 2 * tp:4 * tp].reshape(B, 2, tp, Hh, Wh)
    occ = heads[:, 4 * tp:5 * tp].reshape(B, 1, tp, Hh, Wh)
    socc = heads[:, 5 * tp:6 * tp].reshape(B, 1, tp, Hh, Wh)
    output_dict["dense_motion_bw"] = dense
    output_dict["occlusion_bw"] = occ
    output_dict["sparse_motion_bw"] = sparse
    output_dict["sparse_occ_bw"] = socc

    # ---- occlusion-aware warps (generator stand-in), dense + sparse fused ----
    # TODO(synk): OcclusionAwareGenerator (flow embedder + hourglass refinement).
    src = frames[:, :, ni - 1]                                    # last observed frame
    gen_t, wsp_t, gso_t = warp_with_heads(src, heads, tp)          # each (tp, B, C, HW)

    output_dict["generated"] = jnp.transpose(
        gen_t.reshape(tp, B, C, Hh, Wh), (1, 2, 0, 3, 4))
    output_dict["generated_sparse"] = lax.stop_gradient(
        jnp.transpose(wsp_t.reshape(tp, B, C, Hh, Wh), (1, 2, 0, 3, 4)))
    output_dict["generated_sparse_occ"] = jnp.transpose(
        gso_t.reshape(tp, B, C, Hh, Wh), (1, 2, 0, 3, 4))

    # ---- losses ----
    # TODO(synk): losses.TrainingLosses (perceptual/VGG, trajectory losses) not
    #             available; reduced to Pallas L1 / LSGAN reduction terms.
    loss_dict = {
        "flow_l1": l1_mean(dense, target_bw_of[:, :, ni:]),
        "occ_l1": l1_mean(occ, target_bw_occ[:, :, ni:]),
    }

    gt_t = unbind_cat_b(frames[:, :, ni:])                        # (tp*B, C, Hh, Wh), t-major
    gt2 = gt_t.reshape(tp * B, C, HW)
    fk2 = gen_t.reshape(tp * B, C, HW)

    loss_dict_dis_image = {}
    loss_dict_dis_video = {}
    if train_params["use_image_discriminator"]:
        # TODO(synk): original compares against full-resolution video; the stand-in
        #             generator works at half resolution, so half-res frames are GT.
        d = discriminator_losses(params, gt2, fk2)
        loss_dict["reconstruction_l1"] = d["rec_l1"]
        loss_dict["g_gan_image"] = d["g_gan"]
        if train_params["loss_weights"]["feature_matching_image"] > 0:
            loss_dict["feature_matching_image"] = d["fm"]
        else:
            loss_dict["feature_matching_image"] = jnp.float32(0.0)
        loss_dict_dis_image["d_real"] = d["d_real"]
        loss_dict_dis_image["d_fake"] = d["d_fake"]
    else:
        loss_dict["reconstruction_l1"] = l1_mean(fk2, gt2)
    # TODO(synk): video discriminator branch disabled (use_video_discriminator=False).

    return output_dict, loss_dict, loss_dict_dis_image, loss_dict_dis_video


# --------------------------------------------------------------------------
# Main
# --------------------------------------------------------------------------

if __name__ == "__main__":
    train_params = {
        "num_input_frames": 2,
        "num_predicted_frames": 2,
        "use_image_discriminator": True,
        "use_video_discriminator": False,
        "loss_weights": {"feature_matching_image": 1.0, "feature_matching_video": 1.0},
    }
    model_params = {
        "common_params": {"scale_factor": 0.5, "image_channel": 3},
        "motion_estimator": {"sparse_motion_estimator": {"z_dim": 8}},
        "discriminator": {"in_channel": 3, "ndf": 16, "n_layers_D": 1,
                          "num_D": 1, "padding_mode": "zero"},
        "appearance_encoder": {}, "generator": {}, "flow_embedder": {},
    }

    B, C, H, W = 2, 3, 32, 32
    T = train_params["num_input_frames"] + train_params["num_predicted_frames"]
    key = jax.random.PRNGKey(0)
    ks = jax.random.split(key, 16)
    data_batch = {
        "video": jax.random.normal(ks[0], (B, C, T, H, W), jnp.float32),
        "bg_mask": (jax.random.uniform(ks[1], (B, 1, T, H, W)) > 0.5).astype(jnp.float32),
        "fg_mask": (jax.random.uniform(ks[2], (B, 1, T, H, W)) > 0.5).astype(jnp.float32),
        "instance_mask": jax.random.randint(ks[3], (B, 1, T, H, W), 0, 5).astype(jnp.int32),
        "input_of": 2.0 * jax.random.normal(ks[4], (B, 2, T, H, W), jnp.float32),
        "input_occ": jax.random.uniform(ks[5], (B, 1, T, H, W), jnp.float32),
        "target_bw_of": 2.0 * jax.random.normal(ks[6], (B, 2, T, H, W), jnp.float32),
        "target_bw_occ": jax.random.uniform(ks[7], (B, 1, T, H, W), jnp.float32),
        "target_fw_of": 2.0 * jax.random.normal(ks[8], (B, 2, T, H, W), jnp.float32),
        "target_fw_occ": jax.random.uniform(ks[9], (B, 1, T, H, W), jnp.float32),
        "tracking_gnn": {"x": jax.random.normal(ks[10], (6, 4), jnp.float32)},
    }

    params = init_params(model_params, train_params, jax.random.PRNGKey(42))

    out_dict, loss_dict, loss_d_img, loss_d_vid = generator_full_model_forward(
        params, data_batch, train_params, model_params, ks[11])

    jax.block_until_ready(out_dict["generated"])
    jax.block_until_ready(loss_dict["g_gan_image"])
    jax.block_until_ready(loss_d_img["d_real"])

    Tp = train_params["num_predicted_frames"]
    assert out_dict["generated"].shape == (B, C, Tp, H // 2, W // 2)
    assert out_dict["generated_sparse"].shape == (B, C, Tp, H // 2, W // 2)
    assert out_dict["generated_sparse_occ"].shape == (B, C, Tp, H // 2, W // 2)
    assert out_dict["dense_motion_bw"].shape == (B, 2, Tp, H // 2, W // 2)
    assert out_dict["occlusion_bw"].shape == (B, 1, Tp, H // 2, W // 2)
    for v in list(loss_dict.values()) + list(loss_d_img.values()):
        assert jnp.isfinite(v)

    print("KERNEL_OK")
</pallas_src>

<mosaic_0001>
module attributes {stable_mosaic.version = 11 : i64} {
  func.func @_resize_half_kernel(%arg0: i32, %arg1: memref<1024x32xf32, #tpu.memory_space<vmem>>, %arg2: memref<32x16xf32, #tpu.memory_space<vmem>>, %arg3: memref<512x16xf32, #tpu.memory_space<vmem>>) attributes {dimension_semantics = [#tpu.dimension_semantics<parallel>], iteration_bounds = array<i64: 3>, scalar_prefetch = 0 : i64, scratch_operands = 0 : i64, tpu.core_type = #tpu.core_type<tc>, window_params = [{transform_indices = @transform_0, window_bounds = array<i64: 1024, 32>}, {pipeline_mode = #tpu.pipeline_mode<synchronous>, transform_indices = @transform_1, window_bounds = array<i64: 32, 16>}, {transform_indices = @transform_2, window_bounds = array<i64: 512, 16>}]} {
    %c0 = arith.constant 0 : index
    %c0_0 = arith.constant 0 : index
    %0 = tpu.strided_load %arg1[%c0, %c0_0] {strides = array<i32: 2, 1>} : memref<1024x32xf32, #tpu.memory_space<vmem>>, vector<512x32xf32>
    %c1 = arith.constant 1 : index
    %c0_1 = arith.constant 0 : index
    %1 = tpu.strided_load %arg1[%c1, %c0_1] {strides = array<i32: 2, 1>} : memref<1024x32xf32, #tpu.memory_space<vmem>>, vector<512x32xf32>
    %2 = arith.addf %0, %1 : vector<512x32xf32>
    %cst = arith.constant 5.000000e-01 : f32
    %3 = vector.broadcast %cst : f32 to vector<512x32xf32>
    %4 = arith.mulf %2, %3 : vector<512x32xf32>
    %c0_2 = arith.constant 0 : index
    %c0_3 = arith.constant 0 : index
    %5 = vector.load %arg2[%c0_2, %c0_3] : memref<32x16xf32, #tpu.memory_space<vmem>>, vector<32x16xf32>
    %cst_4 = arith.constant dense<0.000000e+00> : vector<512x16xf32>
    %6 = tpu.matmul %4, %5, %cst_4 {dimension_numbers = #tpu.dot_dimension_numbers<[1], [0], [0], [1], [0, 0, 1, 1], [], []>} : vector<512x32xf32>, vector<32x16xf32>, vector<512x16xf32> -> vector<512x16xf32>
    %c0_5 = arith.constant 0 : index
    %c0_6 = arith.constant 0 : index
    %7 = vector.load %arg3[%c0_5, %c0_6] : memref<512x16xf32, #tpu.memory_space<vmem>>, vector<512x16xf32>
    tpu.vector_store %arg3[%c0_5, %c0_6], %6 {strides = array<i32>} : memref<512x16xf32, #tpu.memory_space<vmem>>, vector<512x16xf32>,
    return
  }
  func.func @transform_0(%arg0: i32) -> (i32, i32) {
    %c0_i32 = arith.constant 0 : i32
    %c0_i32_0 = arith.constant 0 : i32
    return %arg0, %c0_i32 : i32, i32
  }
  func.func @transform_1(%arg0: i32) -> (i32, i32) {
    %c0_i32 = arith.constant 0 : i32
    %c0_i32_0 = arith.constant 0 : i32
    %c0_i32_1 = arith.constant 0 : i32
    return %c0_i32, %c0_i32_0 : i32, i32
  }
  func.func @transform_2(%arg0: i32) -> (i32, i32) {
    %c0_i32 = arith.constant 0 : i32
    %c0_i32_0 = arith.constant 0 : i32
    return %arg0, %c0_i32 : i32, i32
  }
}

</mosaic_0001>

<llo_original>
// kernel: tpu_custom_call.1
$region0: #{tpu_custom_call.1}
  #allocation0 [shape = 'u32[]', space=smem, size = 0x4, offset = 0x4, fixed_abs, tag = 'smem constant byte address 0x4 - core index']
  #allocation1 [shape = 'u32[144,128]{1,0:T(1,128)}', space=vmem, size = 0x12000, scoped, tag = 'internal scratch']
  %s0 = inlined_call_operand.vmem [shape: f32[3072,32], index: 0, kind: input, shape index: {}]
  %s1 = inlined_call_operand.vmem [shape: f32[32,16], index: 1, kind: input, shape index: {}]
  %s2 = inlined_call_operand.vmem [shape: f32[1536,16], index: 2, kind: output, shape index: {}]
  %s3 = sld [smem:[#allocation0]]
  $region41: #{tpu_custom_call.1} parent=0
    _
  %s5 = ssub.s32 1, %s3
  %s6 = scalar_select 0, %s5, %s3
  loop: start=0, step=1, limit=5
  $region2: #{tpu_custom_call.1} parent=0 // loop_pre_header
    _
  $region3: #{tpu_custom_call.1} parent=0 // loop_header
    %s8 = sphi 0, %s12
    %p9 = scmp.ge.s32.totalorder %s8, 5
    %s18 = sphi 0, %s20
    %s21 = sphi 0, %s18
    %s22 = sphi 0, %s21
    %s38 = sphi 0, %s22
    %s42 = sphi 0, %s42
    %s44 = sphi 0, %s42
    %s45 = sphi 0, %s44
    %s59 = sphi 0, %s45
    %s65 = sphi 0, %s67
    %s68 = sphi 0, %s65
    %s69 = sphi 0, %s68
    %s85 = sphi 0, %s69
  $region4: #{tpu_custom_call.1} parent=0 // loop_header_branch
    %11 = sbr.rel (%p9) target = $region8
  $region5: #{tpu_custom_call.1} parent=0 // loop_body
    %s13 = ssub.s32 %s8, 1
    %s14 = ssub.s32 %s8, 2
    %s15 = sadd.s32 %s8, 1
    %s16 = ssub.s32 %s8, %s15
    %p17 = scmp.eq.s32.totalorder %s16, 0
    %s19 = sadd.s32 %s18, 1
    %s20 = scalar_select %p17, %s18, %s19
    %p23 = pneg %p17
    %p24 = scmp.eq.s32.totalorder %s8, 2
    %p25 = por %p23, %p24
    %p26 = scmp.ne.s32.totalorder %s18, %s21
    %p27 = scmp.eq.s32.totalorder %s8, 0
    %p28 = por %p26, %p27
    %p29 = scmp.ne.s32.totalorder %s18, %s21
    %p30 = scmp.eq.s32.totalorder %s13, 2
    %p31 = por %p29, %p30
    %p32 = scmp.ne.s32.totalorder %s21, %s22
    %p33 = scmp.eq.s32.totalorder %s13, 0
    %p34 = por %p32, %p33
    %p35 = scmp.ne.s32.totalorder %s21, %s22
    %p36 = scmp.eq.s32.totalorder %s14, 2
    %p37 = por %p35, %p36
    %p39 = scmp.ne.s32.totalorder %s22, %s38
    %p40 = scmp.eq.s32.totalorder %s14, 0
    %p41 = por %p39, %p40
    %s43 = sadd.s32 %s42, 1
    %p46 = scmp.eq.s32.totalorder %s8, 2
    %p47 = scmp.ne.s32.totalorder %s42, %s44
    %p48 = scmp.eq.s32.totalorder %s8, 0
    %p49 = por %p47, %p48
    %p50 = scmp.ne.s32.totalorder %s42, %s44
    %p51 = scmp.eq.s32.totalorder %s13, 2
    %p52 = por %p50, %p51
    %p53 = scmp.ne.s32.totalorder %s44, %s45
    %p54 = scmp.eq.s32.totalorder %s13, 0
    %p55 = por %p53, %p54
    %p56 = scmp.ne.s32.totalorder %s44, %s45
    %p57 = scmp.eq.s32.totalorder %s14, 2
    %p58 = por %p56, %p57
    %p60 = scmp.ne.s32.totalorder %s45, %s59
    %p61 = scmp.eq.s32.totalorder %s14, 0
    %p62 = por %p60, %p61
    %s63 = ssub.s32 %s8, %s15
    %p64 = scmp.eq.s32.totalorder %s63, 0
    %s66 = sadd.s32 %s65, 1
    %s67 = scalar_select %p64, %s65, %s66
    %p70 = pneg %p64
    %p71 = scmp.eq.s32.totalorder %s8, 2
    %p72 = por %p70, %p71
    %p73 = scmp.ne.s32.totalorder %s65, %s68
    %p74 = scmp.eq.s32.totalorder %s8, 0
    %p75 = por %p73, %p74
    %p76 = scmp.ne.s32.totalorder %s65, %s68
    %p77 = scmp.eq.s32.totalorder %s13, 2
    %p78 = por %p76, %p77
    %p79 = scmp.ne.s32.totalorder %s68, %s69
    %p80 = scmp.eq.s32.totalorder %s13, 0
    %p81 = por %p79, %p80
    %p82 = scmp.ne.s32.totalorder %s68, %s69
    %p83 = scmp.eq.s32.totalorder %s14, 2
    %p84 = por %p82, %p83
    %p86 = scmp.ne.s32.totalorder %s69, %s85
    %p87 = scmp.eq.s32.totalorder %s14, 0
    %p88 = por %p86, %p87
    %p89 = scmp.le.s32.totalorder 1, %s8
    %p90 = scmp.lt.s32.totalorder %s8, 4
    %p91 = pnand %p89, %p90
    %p92 = pneg %p91
    // Predicated region
    $region9: #{tpu_custom_call.1} parent=5 // pred_check
      _
    $region10: #{tpu_custom_call.1} parent=5 // pred_check_branch
      %94 = sbr.rel (%p91) target = $region12
    $region11: #{tpu_custom_call.1} parent=5 // pred_region
      %s95 = ssub.s32 %s8, 1
      // Predicated region
      $region13: #{tpu_custom_call.1} parent=11 // pred_check
        %p96 = pneg %p55
      $region14: #{tpu_custom_call.1} parent=11 // pred_check_branch
        %98 = sbr.rel (%p96) target = $region16
      $region15: #{tpu_custom_call.1} parent=11 // pred_region
        _
      $region16: #{tpu_custom_call.1} parent=11 // pred_fallthru
        _
    $region12: #{tpu_custom_call.1} parent=5 // pred_fallthru
      _
    %p99 = scmp.lt.s32.totalorder %s8, 3
    // Predicated region
    $region17: #{tpu_custom_call.1} parent=5 // pred_check
      %p100 = pneg %p99
    $region18: #{tpu_custom_call.1} parent=5 // pred_check_branch
      %102 = sbr.rel (%p100) target = $region20
    $region19: #{tpu_custom_call.1} parent=5 // pred_region
      // Predicated region
      $region21: #{tpu_custom_call.1} parent=19 // pred_check
        %p103 = pneg %p28
      $region22: #{tpu_custom_call.1} parent=19 // pred_check_branch
        %105 = sbr.rel (%p103) target = $region24
      $region23: #{tpu_custom_call.1} parent=19 // pred_region
        %s106 = smul.u32 128, %s8
        %p107 = scmp.lt.s32.totalorder %s106, 383
        %s108 = scalar_select %p107, %s106, 383
        %s109 = smul.addr %s108, 8
        %s110 = scalar_lea.vmem %s0, %s109
        %s111 = smul.u32 128, %s8
      $region24: #{tpu_custom_call.1} parent=19 // pred_fallthru
        _
    $region20: #{tpu_custom_call.1} parent=5 // pred_fallthru
      _
    %p112 = scmp.le.s32.totalorder 1, %s8
    %p113 = scmp.lt.s32.totalorder %s8, 4
    %p114 = pnand %p112, %p113
    %p115 = pneg %p114
    // Predicated region
    $region25: #{tpu_custom_call.1} parent=5 // pred_check
      _
    $region26: #{tpu_custom_call.1} parent=5 // pred_check_branch
      %117 = sbr.rel (%p114) target = $region28
    $region27: #{tpu_custom_call.1} parent=5 // pred_region
      %s118 = ssub.s32 %s8, 1
      %s119 = smul.u32 128, %s13
      %p120 = scmp.lt.s32.totalorder %s119, 383
      %s121 = scalar_select %p120, %s119, 383
      %s122 = smul.addr %s121, 8
      %s123 = scalar_lea.vmem %s0, %s122
      %p124 = pneg %p34
      %p125 = pneg %p31
      %p126 = pneg %p55
      %p127 = pneg %p52
      %p128 = pneg %p81
      %p129 = pneg %p78
      %s130 = smul.u32 64, %s13
      %p131 = scmp.lt.s32.totalorder %s130, 191
      %s132 = scalar_select %p131, %s130, 191
      %s133 = smul.addr %s132, 8
      %s134 = scalar_lea.vmem %s2, %s133
      %s135 = smul.u32 128, %s13
      %p136 = scmp.lt.s32.totalorder %s135, 383
      %s137 = scalar_select %p136, %s135, 383
      %s138 = smul.addr %s137, 8
      %s139 = scalar_lea.vmem %s0, %s138
      %s140 = smul.u32 128, %s13
      %s141 = smul.u32 64, %s13
      %p142 = scmp.lt.s32.totalorder %s141, 191
      %s143 = scalar_select %p142, %s141, 191
      %s144 = smul.addr %s143, 8
      %s145 = scalar_lea.vmem %s2, %s144
      %s146 = smul.u32 64, %s13
      %v147 = vld [vmem:[%s139] ss:$2 sm:$0xff]
      %s148 = scalar_lea.vmem %s139, 16
      %v149 = vld [vmem:[%s148] ss:$2 sm:$0xff]
      %s150 = scalar_lea.vmem %s139, 32
      %v151 = vld [vmem:[%s150] ss:$2 sm:$0xff]
      %s152 = scalar_lea.vmem %s139, 48
      %v153 = vld [vmem:[%s152] ss:$2 sm:$0xff]
      %s154 = scalar_lea.vmem %s139, 64
      %v155 = vld [vmem:[%s154] ss:$2 sm:$0xff]
      %s156 = scalar_lea.vmem %s139, 80
      %v157 = vld [vmem:[%s156] ss:$2 sm:$0xff]
      %s158 = scalar_lea.vmem %s139, 96
      %v159 = vld [vmem:[%s158] ss:$2 sm:$0xff]
      %s160 = scalar_lea.vmem %s139, 112
      %v161 = vld [vmem:[%s160] ss:$2 sm:$0xff]
      %s162 = scalar_lea.vmem %s139, 128
      %v163 = vld [vmem:[%s162] ss:$2 sm:$0xff]
      %s164 = scalar_lea.vmem %s139, 144
      %v165 = vld [vmem:[%s164] ss:$2 sm:$0xff]
      %s166 = scalar_lea.vmem %s139, 160
      %v167 = vld [vmem:[%s166] ss:$2 sm:$0xff]
      %s168 = scalar_lea.vmem %s139, 176
      %v169 = vld [vmem:[%s168] ss:$2 sm:$0xff]
      %s170 = scalar_lea.vmem %s139, 192
      %v171 = vld [vmem:[%s170] ss:$2 sm:$0xff]
      %s172 = scalar_lea.vmem %s139, 208
      %v173 = vld [vmem:[%s172] ss:$2 sm:$0xff]
      %s174 = scalar_lea.vmem %s139, 224
      %v175 = vld [vmem:[%s174] ss:$2 sm:$0xff]
      %s176 = scalar_lea.vmem %s139, 240
      %v177 = vld [vmem:[%s176] ss:$2 sm:$0xff]
      %s178 = scalar_lea.vmem %s139, 256
      %v179 = vld [vmem:[%s178] ss:$2 sm:$0xff]
      %s180 = scalar_lea.vmem %s139, 272
      %v181 = vld [vmem:[%s180] ss:$2 sm:$0xff]
      %s182 = scalar_lea.vmem %s139, 288
      %v183 = vld [vmem:[%s182] ss:$2 sm:$0xff]
      %s184 = scalar_lea.vmem %s139, 304
      %v185 = vld [vmem:[%s184] ss:$2 sm:$0xff]
      %s186 = scalar_lea.vmem %s139, 320
      %v187 = vld [vmem:[%s186] ss:$2 sm:$0xff]
      %s188 = scalar_lea.vmem %s139, 336
      %v189 = vld [vmem:[%s188] ss:$2 sm:$0xff]
      %s190 = scalar_lea.vmem %s139, 352
      %v191 = vld [vmem:[%s190] ss:$2 sm:$0xff]
      %s192 = scalar_lea.vmem %s139, 368
      %v193 = vld [vmem:[%s192] ss:$2 sm:$0xff]
      %s194 = scalar_lea.vmem %s139, 384
      %v195 = vld [vmem:[%s194] ss:$2 sm:$0xff]
      %s196 = scalar_lea.vmem %s139, 400
      %v197 = vld [vmem:[%s196] ss:$2 sm:$0xff]
      %s198 = scalar_lea.vmem %s139, 416
      %v199 = vld [vmem:[%s198] ss:$2 sm:$0xff]
      %s200 = scalar_lea.vmem %s139, 432
      %v201 = vld [vmem:[%s200] ss:$2 sm:$0xff]
      %s202 = scalar_lea.vmem %s139, 448
      %v203 = vld [vmem:[%s202] ss:$2 sm:$0xff]
      %s204 = scalar_lea.vmem %s139, 464
      %v205 = vld [vmem:[%s204] ss:$2 sm:$0xff]
      %s206 = scalar_lea.vmem %s139, 480
      %v207 = vld [vmem:[%s206] ss:$2 sm:$0xff]
      %s208 = scalar_lea.vmem %s139, 496
      %v209 = vld [vmem:[%s208] ss:$2 sm:$0xff]
      %s210 = scalar_lea.vmem %s139, 512
      %v211 = vld [vmem:[%s210] ss:$2 sm:$0xff]
      %s212 = scalar_lea.vmem %s139, 528
      %v213 = vld [vmem:[%s212] ss:$2 sm:$0xff]
      %s214 = scalar_lea.vmem %s139, 544
      %v215 = vld [vmem:[%s214] ss:$2 sm:$0xff]
      %s216 = scalar_lea.vmem %s139, 560
      %v217 = vld [vmem:[%s216] ss:$2 sm:$0xff]
      %s218 = scalar_lea.vmem %s139, 576
      %v219 = vld [vmem:[%s218] ss:$2 sm:$0xff]
      %s220 = scalar_lea.vmem %s139, 592
      %v221 = vld [vmem:[%s220] ss:$2 sm:$0xff]
      %s222 = scalar_lea.vmem %s139, 608
      %v223 = vld [vmem:[%s222] ss:$2 sm:$0xff]
      %s224 = scalar_lea.vmem %s139, 624
      %v225 = vld [vmem:[%s224] ss:$2 sm:$0xff]
      %s226 = scalar_lea.vmem %s139, 640
      %v227 = vld [vmem:[%s226] ss:$2 sm:$0xff]
      %s228 = scalar_lea.vmem %s139, 656
      %v229 = vld [vmem:[%s228] ss:$2 sm:$0xff]
      %s230 = scalar_lea.vmem %s139, 672
      %v231 = vld [vmem:[%s230] ss:$2 sm:$0xff]
      %s232 = scalar_lea.vmem %s139, 688
      %v233 = vld [vmem:[%s232] ss:$2 sm:$0xff]
      %s234 = scalar_lea.vmem %s139, 704
      %v235 = vld [vmem:[%s234] ss:$2 sm:$0xff]
      %s236 = scalar_lea.vmem %s139, 720
      %v237 = vld [vmem:[%s236] ss:$2 sm:$0xff]
      %s238 = scalar_lea.vmem %s139, 736
      %v239 = vld [vmem:[%s238] ss:$2 sm:$0xff]
      %s240 = scalar_lea.vmem %s139, 752
      %v241 = vld [vmem:[%s240] ss:$2 sm:$0xff]
      %s242 = scalar_lea.vmem %s139, 768
      %v243 = vld [vmem:[%s242] ss:$2 sm:$0xff]
      %s244 = scalar_lea.vmem %s139, 784
      %v245 = vld [vmem:[%s244] ss:$2 sm:$0xff]
      %s246 = scalar_lea.vmem %s139, 800
      %v247 = vld [vmem:[%s246] ss:$2 sm:$0xff]
      %s248 = scalar_lea.vmem %s139, 816
      %v249 = vld [vmem:[%s248] ss:$2 sm:$0xff]
      %s250 = scalar_lea.vmem %s139, 832
      %v251 = vld [vmem:[%s250] ss:$2 sm:$0xff]
      %s252 = scalar_lea.vmem %s139, 848
      %v253 = vld [vmem:[%s252] ss:$2 sm:$0xff]
      %s254 = scalar_lea.vmem %s139, 864
      %v255 = vld [vmem:[%s254] ss:$2 sm:$0xff]
      %s256 = scalar_lea.vmem %s139, 880
      %v257 = vld [vmem:[%s256] ss:$2 sm:$0xff]
      %s258 = scalar_lea.vmem %s139, 896
      %v259 = vld [vmem:[%s258] ss:$2 sm:$0xff]
      %s260 = scalar_lea.vmem %s139, 912
      %v261 = vld [vmem:[%s260] ss:$2 sm:$0xff]
      %s262 = scalar_lea.vmem %s139, 928
      %v263 = vld [vmem:[%s262] ss:$2 sm:$0xff]
      %s264 = scalar_lea.vmem %s139, 944
      %v265 = vld [vmem:[%s264] ss:$2 sm:$0xff]
      %s266 = scalar_lea.vmem %s139, 960
      %v267 = vld [vmem:[%s266] ss:$2 sm:$0xff]
      %s268 = scalar_lea.vmem %s139, 976
      %v269 = vld [vmem:[%s268] ss:$2 sm:$0xff]
      %s270 = scalar_lea.vmem %s139, 992
      %v271 = vld [vmem:[%s270] ss:$2 sm:$0xff]
      %s272 = scalar_lea.vmem %s139, 1008
      %v273 = vld [vmem:[%s272] ss:$2 sm:$0xff]
      %s274 = scalar_lea.vmem %s139, 1
      %v275 = vld [vmem:[%s274] ss:$2 sm:$0xff]
      %s276 = scalar_lea.vmem %s139, 17
      %v277 = vld [vmem:[%s276] ss:$2 sm:$0xff]
      %s278 = scalar_lea.vmem %s139, 33
      %v279 = vld [vmem:[%s278] ss:$2 sm:$0xff]
      %s280 = scalar_lea.vmem %s139, 49
      %v281 = vld [vmem:[%s280] ss:$2 sm:$0xff]
      %s282 = scalar_lea.vmem %s139, 65
      %v283 = vld [vmem:[%s282] ss:$2 sm:$0xff]
      %s284 = scalar_lea.vmem %s139, 81
      %v285 = vld [vmem:[%s284] ss:$2 sm:$0xff]
      %s286 = scalar_lea.vmem %s139, 97
      %v287 = vld [vmem:[%s286] ss:$2 sm:$0xff]
      %s288 = scalar_lea.vmem %s139, 113
      %v289 = vld [vmem:[%s288] ss:$2 sm:$0xff]
      %s290 = scalar_lea.vmem %s139, 129
      %v291 = vld [vmem:[%s290] ss:$2 sm:$0xff]
      %s292 = scalar_lea.vmem %s139, 145
      %v293 = vld [vmem:[%s292] ss:$2 sm:$0xff]
      %s294 = scalar_lea.vmem %s139, 161
      %v295 = vld [vmem:[%s294] ss:$2 sm:$0xff]
      %s296 = scalar_lea.vmem %s139, 177
      %v297 = vld [vmem:[%s296] ss:$2 sm:$0xff]
      %s298 = scalar_lea.vmem %s139, 193
      %v299 = vld [vmem:[%s298] ss:$2 sm:$0xff]
      %s300 = scalar_lea.vmem %s139, 209
      %v301 = vld [vmem:[%s300] ss:$2 sm:$0xff]
      %s302 = scalar_lea.vmem %s139, 225
      %v303 = vld [vmem:[%s302] ss:$2 sm:$0xff]
      %s304 = scalar_lea.vmem %s139, 241
      %v305 = vld [vmem:[%s304] ss:$2 sm:$0xff]
      %s306 = scalar_lea.vmem %s139, 257
      %v307 = vld [vmem:[%s306] ss:$2 sm:$0xff]
      %s308 = scalar_lea.vmem %s139, 273
      %v309 = vld [vmem:[%s308] ss:$2 sm:$0xff]
      %s310 = scalar_lea.vmem %s139, 289
      %v311 = vld [vmem:[%s310] ss:$2 sm:$0xff]
      %s312 = scalar_lea.vmem %s139, 305
      %v313 = vld [vmem:[%s312] ss:$2 sm:$0xff]
      %s314 = scalar_lea.vmem %s139, 321
      %v315 = vld [vmem:[%s314] ss:$2 sm:$0xff]
      %s316 = scalar_lea.vmem %s139, 337
      %v317 = vld [vmem:[%s316] ss:$2 sm:$0xff]
      %s318 = scalar_lea.vmem %s139, 353
      %v319 = vld [vmem:[%s318] ss:$2 sm:$0xff]
      %s320 = scalar_lea.vmem %s139, 369
      %v321 = vld [vmem:[%s320] ss:$2 sm:$0xff]
      %s322 = scalar_lea.vmem %s139, 385
      %v323 = vld [vmem:[%s322] ss:$2 sm:$0xff]
      %s324 = scalar_lea.vmem %s139, 401
      %v325 = vld [vmem:[%s324] ss:$2 sm:$0xff]
      %s326 = scalar_lea.vmem %s139, 417
      %v327 = vld [vmem:[%s326] ss:$2 sm:$0xff]
      %s328 = scalar_lea.vmem %s139, 433
      %v329 = vld [vmem:[%s328] ss:$2 sm:$0xff]
      %s330 = scalar_lea.vmem %s139, 449
      %v331 = vld [vmem:[%s330] ss:$2 sm:$0xff]
      %s332 = scalar_lea.vmem %s139, 465
      %v333 = vld [vmem:[%s332] ss:$2 sm:$0xff]
      %s334 = scalar_lea.vmem %s139, 481
      %v335 = vld [vmem:[%s334] ss:$2 sm:$0xff]
      %s336 = scalar_lea.vmem %s139, 497
      %v337 = vld [vmem:[%s336] ss:$2 sm:$0xff]
      %s338 = scalar_lea.vmem %s139, 513
      %v339 = vld [vmem:[%s338] ss:$2 sm:$0xff]
      %s340 = scalar_lea.vmem %s139, 529
      %v341 = vld [vmem:[%s340] ss:$2 sm:$0xff]
      %s342 = scalar_lea.vmem %s139, 545
      %v343 = vld [vmem:[%s342] ss:$2 sm:$0xff]
      %s344 = scalar_lea.vmem %s139, 561
      %v345 = vld [vmem:[%s344] ss:$2 sm:$0xff]
      %s346 = scalar_lea.vmem %s139, 577
      %v347 = vld [vmem:[%s346] ss:$2 sm:$0xff]
      %s348 = scalar_lea.vmem %s139, 593
      %v349 = vld [vmem:[%s348] ss:$2 sm:$0xff]
      %s350 = scalar_lea.vmem %s139, 609
      %v351 = vld [vmem:[%s350] ss:$2 sm:$0xff]
      %s352 = scalar_lea.vmem %s139, 625
      %v353 = vld [vmem:[%s352] ss:$2 sm:$0xff]
      %s354 = scalar_lea.vmem %s139, 641
      %v355 = vld [vmem:[%s354] ss:$2 sm:$0xff]
      %s356 = scalar_lea.vmem %s139, 657
      %v357 = vld [vmem:[%s356] ss:$2 sm:$0xff]
      %s358 = scalar_lea.vmem %s139, 673
      %v359 = vld [vmem:[%s358] ss:$2 sm:$0xff]
      %s360 = scalar_lea.vmem %s139, 689
      %v361 = vld [vmem:[%s360] ss:$2 sm:$0xff]
      %s362 = scalar_lea.vmem %s139, 705
      %v363 = vld [vmem:[%s362] ss:$2 sm:$0xff]
      %s364 = scalar_lea.vmem %s139, 721
      %v365 = vld [vmem:[%s364] ss:$2 sm:$0xff]
      %s366 = scalar_lea.vmem %s139, 737
      %v367 = vld [vmem:[%s366] ss:$2 sm:$0xff]
      %s368 = scalar_lea.vmem %s139, 753
      %v369 = vld [vmem:[%s368] ss:$2 sm:$0xff]
      %s370 = scalar_lea.vmem %s139, 769
      %v371 = vld [vmem:[%s370] ss:$2 sm:$0xff]
      %s372 = scalar_lea.vmem %s139, 785
      %v373 = vld [vmem:[%s372] ss:$2 sm:$0xff]
      %s374 = scalar_lea.vmem %s139, 801
      %v375 = vld [vmem:[%s374] ss:$2 sm:$0xff]
      %s376 = scalar_lea.vmem %s139, 817
      %v377 = vld [vmem:[%s376] ss:$2 sm:$0xff]
      %s378 = scalar_lea.vmem %s139, 833
      %v379 = vld [vmem:[%s378] ss:$2 sm:$0xff]
      %s380 = scalar_lea.vmem %s139, 849
      %v381 = vld [vmem:[%s380] ss:$2 sm:$0xff]
      %s382 = scalar_lea.vmem %s139, 865
      %v383 = vld [vmem:[%s382] ss:$2 sm:$0xff]
      %s384 = scalar_lea.vmem %s139, 881
      %v385 = vld [vmem:[%s384] ss:$2 sm:$0xff]
      %s386 = scalar_lea.vmem %s139, 897
      %v387 = vld [vmem:[%s386] ss:$2 sm:$0xff]
      %s388 = scalar_lea.vmem %s139, 913
      %v389 = vld [vmem:[%s388] ss:$2 sm:$0xff]
      %s390 = scalar_lea.vmem %s139, 929
      %v391 = vld [vmem:[%s390] ss:$2 sm:$0xff]
      %s392 = scalar_lea.vmem %s139, 945
      %v393 = vld [vmem:[%s392] ss:$2 sm:$0xff]
      %s394 = scalar_lea.vmem %s139, 961
      %v395 = vld [vmem:[%s394] ss:$2 sm:$0xff]
      %s396 = scalar_lea.vmem %s139, 977
      %v397 = vld [vmem:[%s396] ss:$2 sm:$0xff]
      %s398 = scalar_lea.vmem %s139, 993
      %v399 = vld [vmem:[%s398] ss:$2 sm:$0xff]
      %s400 = scalar_lea.vmem %s139, 1009
      %v401 = vld [vmem:[%s400] ss:$2 sm:$0xff]
      %v402 = vadd.f32 %v147, %v275
      %v403 = vadd.f32 %v149, %v277
      %v404 = vadd.f32 %v151, %v279
      %v405 = vadd.f32 %v153, %v281
      %v406 = vadd.f32 %v155, %v283
      %v407 = vadd.f32 %v157, %v285
      %v408 = vadd.f32 %v159, %v287
      %v409 = vadd.f32 %v161, %v289
      %v410 = vadd.f32 %v163, %v291
      %v411 = vadd.f32 %v165, %v293
      %v412 = vadd.f32 %v167, %v295
      %v413 = vadd.f32 %v169, %v297
      %v414 = vadd.f32 %v171, %v299
      %v415 = vadd.f32 %v173, %v301
      %v416 = vadd.f32 %v175, %v303
      %v417 = vadd.f32 %v177, %v305
      %v418 = vadd.f32 %v179, %v307
      %v419 = vadd.f32 %v181, %v309
      %v420 = vadd.f32 %v183, %v311
      %v421 = vadd.f32 %v185, %v313
      %v422 = vadd.f32 %v187, %v315
      %v423 = vadd.f32 %v189, %v317
      %v424 = vadd.f32 %v191, %v319
      %v425 = vadd.f32 %v193, %v321
      %v426 = vadd.f32 %v195, %v323
      %v427 = vadd.f32 %v197, %v325
      %v428 = vadd.f32 %v199, %v327
      %v429 = vadd.f32 %v201, %v329
      %v430 = vadd.f32 %v203, %v331
      %v431 = vadd.f32 %v205, %v333
      %v432 = vadd.f32 %v207, %v335
      %v433 = vadd.f32 %v209, %v337
      %v434 = vadd.f32 %v211, %v339
      %v435 = vadd.f32 %v213, %v341
      %v436 = vadd.f32 %v215, %v343
      %v437 = vadd.f32 %v217, %v345
      %v438 = vadd.f32 %v219, %v347
      %v439 = vadd.f32 %v221, %v349
      %v440 = vadd.f32 %v223, %v351
      %v441 = vadd.f32 %v225, %v353
      %v442 = vadd.f32 %v227, %v355
      %v443 = vadd.f32 %v229, %v357
      %v444 = vadd.f32 %v231, %v359
      %v445 = vadd.f32 %v233, %v361
      %v446 = vadd.f32 %v235, %v363
      %v447 = vadd.f32 %v237, %v365
      %v448 = vadd.f32 %v239, %v367
      %v449 = vadd.f32 %v241, %v369
      %v450 = vadd.f32 %v243, %v371
      %v451 = vadd.f32 %v245, %v373
      %v452 = vadd.f32 %v247, %v375
      %v453 = vadd.f32 %v249, %v377
      %v454 = vadd.f32 %v251, %v379
      %v455 = vadd.f32 %v253, %v381
      %v456 = vadd.f32 %v255, %v383
      %v457 = vadd.f32 %v257, %v385
      %v458 = vadd.f32 %v259, %v387
      %v459 = vadd.f32 %v261, %v389
      %v460 = vadd.f32 %v263, %v391
      %v461 = vadd.f32 %v265, %v393
      %v462 = vadd.f32 %v267, %v395
      %v463 = vadd.f32 %v269, %v397
      %v464 = vadd.f32 %v271, %v399
      %v465 = vadd.f32 %v273, %v401
      %v466 = vmul.f32 %v402, 0.5
      %v467 = vmul.f32 %v403, 0.5
      %v468 = vmul.f32 %v404, 0.5
      %v469 = vmul.f32 %v405, 0.5
      %v470 = vmul.f32 %v406, 0.5
      %v471 = vmul.f32 %v407, 0.5
      %v472 = vmul.f32 %v408, 0.5
      %v473 = vmul.f32 %v409, 0.5
      %v474 = vmul.f32 %v410, 0.5
      %v475 = vmul.f32 %v411, 0.5
      %v476 = vmul.f32 %v412, 0.5
      %v477 = vmul.f32 %v413, 0.5
      %v478 = vmul.f32 %v414, 0.5
      %v479 = vmul.f32 %v415, 0.5
      %v480 = vmul.f32 %v416, 0.5
      %v481 = vmul.f32 %v417, 0.5
      %v482 = vmul.f32 %v418, 0.5
      %v483 = vmul.f32 %v419, 0.5
      %v484 = vmul.f32 %v420, 0.5
      %v485 = vmul.f32 %v421, 0.5
      %v486 = vmul.f32 %v422, 0.5
      %v487 = vmul.f32 %v423, 0.5
      %v488 = vmul.f32 %v424, 0.5
      %v489 = vmul.f32 %v425, 0.5
      %v490 = vmul.f32 %v426, 0.5
      %v491 = vmul.f32 %v427, 0.5
      %v492 = vmul.f32 %v428, 0.5
      %v493 = vmul.f32 %v429, 0.5
      %v494 = vmul.f32 %v430, 0.5
      %v495 = vmul.f32 %v431, 0.5
      %v496 = vmul.f32 %v432, 0.5
      %v497 = vmul.f32 %v433, 0.5
      %v498 = vmul.f32 %v434, 0.5
      %v499 = vmul.f32 %v435, 0.5
      %v500 = vmul.f32 %v436, 0.5
      %v501 = vmul.f32 %v437, 0.5
      %v502 = vmul.f32 %v438, 0.5
      %v503 = vmul.f32 %v439, 0.5
      %v504 = vmul.f32 %v440, 0.5
      %v505 = vmul.f32 %v441, 0.5
      %v506 = vmul.f32 %v442, 0.5
      %v507 = vmul.f32 %v443, 0.5
      %v508 = vmul.f32 %v444, 0.5
      %v509 = vmul.f32 %v445, 0.5
      %v510 = vmul.f32 %v446, 0.5
      %v511 = vmul.f32 %v447, 0.5
      %v512 = vmul.f32 %v448, 0.5
      %v513 = vmul.f32 %v449, 0.5
      %v514 = vmul.f32 %v450, 0.5
      %v515 = vmul.f32 %v451, 0.5
      %v516 = vmul.f32 %v452, 0.5
      %v517 = vmul.f32 %v453, 0.5
      %v518 = vmul.f32 %v454, 0.5
      %v519 = vmul.f32 %v455, 0.5
      %v520 = vmul.f32 %v456, 0.5
      %v521 = vmul.f32 %v457, 0.5
      %v522 = vmul.f32 %v458, 0.5
      %v523 = vmul.f32 %v459, 0.5
      %v524 = vmul.f32 %v460, 0.5
      %v525 = vmul.f32 %v461, 0.5
      %v526 = vmul.f32 %v462, 0.5
      %v527 = vmul.f32 %v463, 0.5
      %v528 = vmul.f32 %v464, 0.5
      %v529 = vmul.f32 %v465, 0.5
      %v530 = vld [vmem:[%s1] sm:$0xff]
      %v531 = vld [vmem:[%s1 + $0x8] sm:$0xff]
      %v532 = vld [vmem:[%s1 + $0x10] sm:$0xff]
      %v533 = vld [vmem:[%s1 + $0x18] sm:$0xff]
      %vm534 = vcmask 261120
      %v536 = vsel %vm534, %v466, 0
      %v539 = vsel %vm534, %v467, 0
      %v542 = vsel %vm534, %v468, 0
      %v545 = vsel %vm534, %v469, 0
      %v548 = vsel %vm534, %v470, 0
      %v551 = vsel %vm534, %v471, 0
      %v554 = vsel %vm534, %v472, 0
      %v557 = vsel %vm534, %v473, 0
      %v560 = vsel %vm534, %v474, 0
      %v563 = vsel %vm534, %v475, 0
      %v566 = vsel %vm534, %v476, 0
      %v569 = vsel %vm534, %v477, 0
      %v572 = vsel %vm534, %v478, 0
      %v575 = vsel %vm534, %v479, 0
      %v578 = vsel %vm534, %v480, 0
      %v581 = vsel %vm534, %v481, 0
      %v584 = vsel %vm534, %v482, 0
      %v587 = vsel %vm534, %v483, 0
      %v590 = vsel %vm534, %v484, 0
      %v593 = vsel %vm534, %v485, 0
      %v596 = vsel %vm534, %v486, 0
      %v599 = vsel %vm534, %v487, 0
      %v602 = vsel %vm534, %v488, 0
      %v605 = vsel %vm534, %v489, 0
      %v608 = vsel %vm534, %v490, 0
      %v611 = vsel %vm534, %v491, 0
      %v614 = vsel %vm534, %v492, 0
      %v617 = vsel %vm534, %v493, 0
      %v620 = vsel %vm534, %v494, 0
      %v623 = vsel %vm534, %v495, 0
      %v626 = vsel %vm534, %v496, 0
      %v629 = vsel %vm534, %v497, 0
      %v632 = vsel %vm534, %v498, 0
      %v635 = vsel %vm534, %v499, 0
      %v638 = vsel %vm534, %v500, 0
      %v641 = vsel %vm534, %v501, 0
      %v644 = vsel %vm534, %v502, 0
      %v647 = vsel %vm534, %v503, 0
      %v650 = vsel %vm534, %v504, 0
      %v653 = vsel %vm534, %v505, 0
      %v656 = vsel %vm534, %v506, 0
      %v659 = vsel %vm534, %v507, 0
      %v662 = vsel %vm534, %v508, 0
      %v665 = vsel %vm534, %v509, 0
      %v668 = vsel %vm534, %v510, 0
      %v671 = vsel %vm534, %v511, 0
      %v674 = vsel %vm534, %v512, 0
      %v677 = vsel %vm534, %v513, 0
      %v680 = vsel %vm534, %v514, 0
      %v683 = vsel %vm534, %v515, 0
      %v686 = vsel %vm534, %v516, 0
      %v689 = vsel %vm534, %v517, 0
      %v692 = vsel %vm534, %v518, 0
      %v695 = vsel %vm534, %v519, 0
      %v698 = vsel %vm534, %v520, 0
      %v701 = vsel %vm534, %v521, 0
      %v704 = vsel %vm534, %v522, 0
      %v707 = vsel %vm534, %v523, 0
      %v710 = vsel %vm534, %v524, 0
      %v713 = vsel %vm534, %v525, 0
      %v716 = vsel %vm534, %v526, 0
      %v719 = vsel %vm534, %v527, 0
      %v722 = vsel %vm534, %v528, 0
      %v725 = vsel %vm534, %v529, 0
      %727 = vmatprep.subr.mxu0 0.0
      %728 = vmatpush1.msra.mxu0 0.0
      %729 = vmatprep.subr.mxu0 0.0
      %730 = vmatpush1.msra.mxu0 0.0
      %731 = vmatprep.subr.mxu0 0.0
      %732 = vmatpush1.msra.mxu0 0.0
      %733 = vmatprep.subr.mxu0 0.0
      %734 = vmatpush1.msra.mxu0 0.0
      %735 = vmatprep.subr.mxu0 0.0
      %736 = vmatpush1.msra.mxu0 0.0
      %737 = vmatprep.subr.mxu0 0.0
      %738 = vmatpush1.msra.mxu0 0.0
      %739 = vmatprep.subr.mxu0 0.0
      %740 = vmatpush1.msra.mxu0 0.0
      %741 = vmatprep.subr.mxu0 0.0
      %742 = vmatpush1.msra.mxu0 0.0
      %743 = vmatprep.subr.mxu0 0.0
      %744 = vmatpush1.msra.mxu0 0.0
      %745 = vmatprep.subr.mxu0 0.0
      %746 = vmatpush1.msra.mxu0 0.0
      %747 = vmatprep.subr.mxu0 0.0
      %748 = vmatpush1.msra.mxu0 0.0
      %749 = vmatprep.subr.mxu0 0.0
      %750 = vmatpush1.msra.mxu0 0.0
      %751 = vmatprep.subr.mxu0 0.0
      %752 = vmatpush1.msra.mxu0 %v533
      %753 = vmatprep.subr.mxu0 0.0
      %754 = vmatpush1.msra.mxu0 %v532
      %755 = vmatprep.subr.mxu0 0.0
      %756 = vmatpush1.msra.mxu0 %v531
      %757 = vmatprep.subr.mxu0 0.0
      %758 = vmatpush1.msra.mxu0 %v530
      %759 = vmatprep.subr.mxu0 0.0
      %760 = vmatpush2.msra.mxu0 0.0
      %761 = vmatprep.subr.mxu0 0.0
      %762 = vmatpush2.msra.mxu0 0.0
      %763 = vmatprep.subr.mxu0 0.0
      %764 = vmatpush2.msra.mxu0 0.0
      %765 = vmatprep.subr.mxu0 0.0
      %766 = vmatpush2.msra.mxu0 0.0
      %767 = vmatprep.subr.mxu0 0.0
      %768 = vmatpush2.msra.mxu0 0.0
      %769 = vmatprep.subr.mxu0 0.0
      %770 = vmatpush2.msra.mxu0 0.0
      %771 = vmatprep.subr.mxu0 0.0
      %772 = vmatpush2.msra.mxu0 0.0
      %773 = vmatprep.subr.mxu0 0.0
      %774 = vmatpush2.msra.mxu0 0.0
      %775 = vmatprep.subr.mxu0 0.0
      %776 = vmatpush2.msra.mxu0 0.0
      %777 = vmatprep.subr.mxu0 0.0
      %778 = vmatpush2.msra.mxu0 0.0
      %779 = vmatprep.subr.mxu0 0.0
      %780 = vmatpush2.msra.mxu0 0.0
      %781 = vmatprep.subr.mxu0 0.0
      %782 = vmatpush2.msra.mxu0 0.0
      %783 = vmatprep.subr.mxu0 0.0
      %784 = vmatpush2.msra.mxu0 0.0
      %785 = vmatprep.subr.mxu0 0.0
      %786 = vmatpush2.msra.mxu0 0.0
      %787 = vmatprep.subr.mxu0 0.0
      %788 = vmatpush2.msra.mxu0 0.0
      %789 = vmatprep.subr.mxu0 0.0
      %790 = vmatpush2.msra.mxu0 0.0
      %791 = vmatprep.mubr.f32.mxu0 0.0
      %792 = vmatmul.mubr.f32.gmra.mxu0 %v536
      %v793 = vpop.f32.mrf.mxu0
      %v794 = vadd.f32 0.0, %v793
      %v795 = vpop.f32.mrf.mxu0
      %796 = vmatprep.mubr.f32.mxu0 0.0
      %797 = vmatmul.mubr.f32.gmra.mxu0 %v539
      %v798 = vpop.f32.mrf.mxu0
      %v799 = vadd.f32 0.0, %v798
      %v800 = vpop.f32.mrf.mxu0
      %801 = vmatprep.mubr.f32.mxu0 0.0
      %802 = vmatmul.mubr.f32.gmra.mxu0 %v542
      %v803 = vpop.f32.mrf.mxu0
      %v804 = vadd.f32 0.0, %v803
      %v805 = vpop.f32.mrf.mxu0
      %806 = vmatprep.mubr.f32.mxu0 0.0
      %807 = vmatmul.mubr.f32.gmra.mxu0 %v545
      %v808 = vpop.f32.mrf.mxu0
      %v809 = vadd.f32 0.0, %v808
      %v810 = vpop.f32.mrf.mxu0
      %811 = vmatprep.mubr.f32.mxu0 0.0
      %812 = vmatmul.mubr.f32.gmra.mxu0 %v548
      %v813 = vpop.f32.mrf.mxu0
      %v814 = vadd.f32 0.0, %v813
      %v815 = vpop.f32.mrf.mxu0
      %816 = vmatprep.mubr.f32.mxu0 0.0
      %817 = vmatmul.mubr.f32.gmra.mxu0 %v551
      %v818 = vpop.f32.mrf.mxu0
      %v819 = vadd.f32 0.0, %v818
      %v820 = vpop.f32.mrf.mxu0
      %821 = vmatprep.mubr.f32.mxu0 0.0
      %822 = vmatmul.mubr.f32.gmra.mxu0 %v554
      %v823 = vpop.f32.mrf.mxu0
      %v824 = vadd.f32 0.0, %v823
      %v825 = vpop.f32.mrf.mxu0
      %826 = vmatprep.mubr.f32.mxu0 0.0
      %827 = vmatmul.mubr.f32.gmra.mxu0 %v557
      %v828 = vpop.f32.mrf.mxu0
      %v829 = vadd.f32 0.0, %v828
      %v830 = vpop.f32.mrf.mxu0
      %831 = vmatprep.mubr.f32.mxu0 0.0
      %832 = vmatmul.mubr.f32.gmra.mxu0 %v560
      %v833 = vpop.f32.mrf.mxu0
      %v834 = vadd.f32 0.0, %v833
      %v835 = vpop.f32.mrf.mxu0
      %836 = vmatprep.mubr.f32.mxu0 0.0
      %837 = vmatmul.mubr.f32.gmra.mxu0 %v563
      %v838 = vpop.f32.mrf.mxu0
      %v839 = vadd.f32 0.0, %v838
      %v840 = vpop.f32.mrf.mxu0
      %841 = vmatprep.mubr.f32.mxu0 0.0
      %842 = vmatmul.mubr.f32.gmra.mxu0 %v566
      %v843 = vpop.f32.mrf.mxu0
      %v844 = vadd.f32 0.0, %v843
      %v845 = vpop.f32.mrf.mxu0
      %846 = vmatprep.mubr.f32.mxu0 0.0
      %847 = vmatmul.mubr.f32.gmra.mxu0 %v569
      %v848 = vpop.f32.mrf.mxu0
      %v849 = vadd.f32 0.0, %v848
      %v850 = vpop.f32.mrf.mxu0
      %851 = vmatprep.mubr.f32.mxu0 0.0
      %852 = vmatmul.mubr.f32.gmra.mxu0 %v572
      %v853 = vpop.f32.mrf.mxu0
      %v854 = vadd.f32 0.0, %v853
      %v855 = vpop.f32.mrf.mxu0
      %856 = vmatprep.mubr.f32.mxu0 0.0
      %857 = vmatmul.mubr.f32.gmra.mxu0 %v575
      %v858 = vpop.f32.mrf.mxu0
      %v859 = vadd.f32 0.0, %v858
      %v860 = vpop.f32.mrf.mxu0
      %861 = vmatprep.mubr.f32.mxu0 0.0
      %862 = vmatmul.mubr.f32.gmra.mxu0 %v578
      %v863 = vpop.f32.mrf.mxu0
      %v864 = vadd.f32 0.0, %v863
      %v865 = vpop.f32.mrf.mxu0
      %866 = vmatprep.mubr.f32.mxu0 0.0
      %867 = vmatmul.mubr.f32.gmra.mxu0 %v581
      %v868 = vpop.f32.mrf.mxu0
      %v869 = vadd.f32 0.0, %v868
      %v870 = vpop.f32.mrf.mxu0
      %871 = vmatprep.mubr.f32.mxu0 0.0
      %872 = vmatmul.mubr.f32.gmra.mxu0 %v584
      %v873 = vpop.f32.mrf.mxu0
      %v874 = vadd.f32 0.0, %v873
      %v875 = vpop.f32.mrf.mxu0
      %876 = vmatprep.mubr.f32.mxu0 0.0
      %877 = vmatmul.mubr.f32.gmra.mxu0 %v587
      %v878 = vpop.f32.mrf.mxu0
      %v879 = vadd.f32 0.0, %v878
      %v880 = vpop.f32.mrf.mxu0
      %881 = vmatprep.mubr.f32.mxu0 0.0
      %882 = vmatmul.mubr.f32.gmra.mxu0 %v590
      %v883 = vpop.f32.mrf.mxu0
      %v884 = vadd.f32 0.0, %v883
      %v885 = vpop.f32.mrf.mxu0
      %886 = vmatprep.mubr.f32.mxu0 0.0
      %887 = vmatmul.mubr.f32.gmra.mxu0 %v593
      %v888 = vpop.f32.mrf.mxu0
      %v889 = vadd.f32 0.0, %v888
      %v890 = vpop.f32.mrf.mxu0
      %891 = vmatprep.mubr.f32.mxu0 0.0
      %892 = vmatmul.mubr.f32.gmra.mxu0 %v596
      %v893 = vpop.f32.mrf.mxu0
      %v894 = vadd.f32 0.0, %v893
      %v895 = vpop.f32.mrf.mxu0
      %896 = vmatprep.mubr.f32.mxu0 0.0
      %897 = vmatmul.mubr.f32.gmra.mxu0 %v599
      %v898 = vpop.f32.mrf.mxu0
      %v899 = vadd.f32 0.0, %v898
      %v900 = vpop.f32.mrf.mxu0
      %901 = vmatprep.mubr.f32.mxu0 0.0
      %902 = vmatmul.mubr.f32.gmra.mxu0 %v602
      %v903 = vpop.f32.mrf.mxu0
      %v904 = vadd.f32 0.0, %v903
      %v905 = vpop.f32.mrf.mxu0
      %906 = vmatprep.mubr.f32.mxu0 0.0
      %907 = vmatmul.mubr.f32.gmra.mxu0 %v605
      %v908 = vpop.f32.mrf.mxu0
      %v909 = vadd.f32 0.0, %v908
      %v910 = vpop.f32.mrf.mxu0
      %911 = vmatprep.mubr.f32.mxu0 0.0
      %912 = vmatmul.mubr.f32.gmra.mxu0 %v608
      %v913 = vpop.f32.mrf.mxu0
      %v914 = vadd.f32 0.0, %v913
      %v915 = vpop.f32.mrf.mxu0
      %916 = vmatprep.mubr.f32.mxu0 0.0
      %917 = vmatmul.mubr.f32.gmra.mxu0 %v611
      %v918 = vpop.f32.mrf.mxu0
      %v919 = vadd.f32 0.0, %v918
      %v920 = vpop.f32.mrf.mxu0
      %921 = vmatprep.mubr.f32.mxu0 0.0
      %922 = vmatmul.mubr.f32.gmra.mxu0 %v614
      %v923 = vpop.f32.mrf.mxu0
      %v924 = vadd.f32 0.0, %v923
      %v925 = vpop.f32.mrf.mxu0
      %926 = vmatprep.mubr.f32.mxu0 0.0
      %927 = vmatmul.mubr.f32.gmra.mxu0 %v617
      %v928 = vpop.f32.mrf.mxu0
      %v929 = vadd.f32 0.0, %v928
      %v930 = vpop.f32.mrf.mxu0
      %931 = vmatprep.mubr.f32.mxu0 0.0
      %932 = vmatmul.mubr.f32.gmra.mxu0 %v620
      %v933 = vpop.f32.mrf.mxu0
      %v934 = vadd.f32 0.0, %v933
      %v935 = vpop.f32.mrf.mxu0
      %936 = vmatprep.mubr.f32.mxu0 0.0
      %937 = vmatmul.mubr.f32.gmra.mxu0 %v623
      %v938 = vpop.f32.mrf.mxu0
      %v939 = vadd.f32 0.0, %v938
      %v940 = vpop.f32.mrf.mxu0
      %941 = vmatprep.mubr.f32.mxu0 0.0
      %942 = vmatmul.mubr.f32.gmra.mxu0 %v626
      %v943 = vpop.f32.mrf.mxu0
      %v944 = vadd.f32 0.0, %v943
      %v945 = vpop.f32.mrf.mxu0
      %946 = vmatprep.mubr.f32.mxu0 0.0
      %947 = vmatmul.mubr.f32.gmra.mxu0 %v629
      %v948 = vpop.f32.mrf.mxu0
      %v949 = vadd.f32 0.0, %v948
      %v950 = vpop.f32.mrf.mxu0
      %951 = vmatprep.mubr.f32.mxu0 0.0
      %952 = vmatmul.mubr.f32.gmra.mxu0 %v632
      %v953 = vpop.f32.mrf.mxu0
      %v954 = vadd.f32 0.0, %v953
      %v955 = vpop.f32.mrf.mxu0
      %956 = vmatprep.mubr.f32.mxu0 0.0
      %957 = vmatmul.mubr.f32.gmra.mxu0 %v635
      %v958 = vpop.f32.mrf.mxu0
      %v959 = vadd.f32 0.0, %v958
      %v960 = vpop.f32.mrf.mxu0
      %961 = vmatprep.mubr.f32.mxu0 0.0
      %962 = vmatmul.mubr.f32.gmra.mxu0 %v638
      %v963 = vpop.f32.mrf.mxu0
      %v964 = vadd.f32 0.0, %v963
      %v965 = vpop.f32.mrf.mxu0
      %966 = vmatprep.mubr.f32.mxu0 0.0
      %967 = vmatmul.mubr.f32.gmra.mxu0 %v641
      %v968 = vpop.f32.mrf.mxu0
      %v969 = vadd.f32 0.0, %v968
      %v970 = vpop.f32.mrf.mxu0
      %971 = vmatprep.mubr.f32.mxu0 0.0
      %972 = vmatmul.mubr.f32.gmra.mxu0 %v644
      %v973 = vpop.f32.mrf.mxu0
      %v974 = vadd.f32 0.0, %v973
      %v975 = vpop.f32.mrf.mxu0
      %976 = vmatprep.mubr.f32.mxu0 0.0
      %977 = vmatmul.mubr.f32.gmra.mxu0 %v647
      %v978 = vpop.f32.mrf.mxu0
      %v979 = vadd.f32 0.0, %v978
      %v980 = vpop.f32.mrf.mxu0
      %981 = vmatprep.mubr.f32.mxu0 0.0
      %982 = vmatmul.mubr.f32.gmra.mxu0 %v650
      %v983 = vpop.f32.mrf.mxu0
      %v984 = vadd.f32 0.0, %v983
      %v985 = vpop.f32.mrf.mxu0
      %986 = vmatprep.mubr.f32.mxu0 0.0
      %987 = vmatmul.mubr.f32.gmra.mxu0 %v653
      %v988 = vpop.f32.mrf.mxu0
      %v989 = vadd.f32 0.0, %v988
      %v990 = vpop.f32.mrf.mxu0
      %991 = vmatprep.mubr.f32.mxu0 0.0
      %992 = vmatmul.mubr.f32.gmra.mxu0 %v656
      %v993 = vpop.f32.mrf.mxu0
      %v994 = vadd.f32 0.0, %v993
      %v995 = vpop.f32.mrf.mxu0
      %996 = vmatprep.mubr.f32.mxu0 0.0
      %997 = vmatmul.mubr.f32.gmra.mxu0 %v659
      %v998 = vpop.f32.mrf.mxu0
      %v999 = vadd.f32 0.0, %v998
      %v1000 = vpop.f32.mrf.mxu0
      %1001 = vmatprep.mubr.f32.mxu0 0.0
      %1002 = vmatmul.mubr.f32.gmra.mxu0 %v662
      %v1003 = vpop.f32.mrf.mxu0
      %v1004 = vadd.f32 0.0, %v1003
      %v1005 = vpop.f32.mrf.mxu0
      %1006 = vmatprep.mubr.f32.mxu0 0.0
      %1007 = vmatmul.mubr.f32.gmra.mxu0 %v665
      %v1008 = vpop.f32.mrf.mxu0
      %v1009 = vadd.f32 0.0, %v1008
      %v1010 = vpop.f32.mrf.mxu0
      %1011 = vmatprep.mubr.f32.mxu0 0.0
      %1012 = vmatmul.mubr.f32.gmra.mxu0 %v668
      %v1013 = vpop.f32.mrf.mxu0
      %v1014 = vadd.f32 0.0, %v1013
      %v1015 = vpop.f32.mrf.mxu0
      %1016 = vmatprep.mubr.f32.mxu0 0.0
      %1017 = vmatmul.mubr.f32.gmra.mxu0 %v671
      %v1018 = vpop.f32.mrf.mxu0
      %v1019 = vadd.f32 0.0, %v1018
      %v1020 = vpop.f32.mrf.mxu0
      %1021 = vmatprep.mubr.f32.mxu0 0.0
      %1022 = vmatmul.mubr.f32.gmra.mxu0 %v674
      %v1023 = vpop.f32.mrf.mxu0
      %v1024 = vadd.f32 0.0, %v1023
      %v1025 = vpop.f32.mrf.mxu0
      %1026 = vmatprep.mubr.f32.mxu0 0.0
      %1027 = vmatmul.mubr.f32.gmra.mxu0 %v677
      %v1028 = vpop.f32.mrf.mxu0
      %v1029 = vadd.f32 0.0, %v1028
      %v1030 = vpop.f32.mrf.mxu0
      %1031 = vmatprep.mubr.f32.mxu0 0.0
      %1032 = vmatmul.mubr.f32.gmra.mxu0 %v680
      %v1033 = vpop.f32.mrf.mxu0
      %v1034 = vadd.f32 0.0, %v1033
      %v1035 = vpop.f32.mrf.mxu0
      %1036 = vmatprep.mubr.f32.mxu0 0.0
      %1037 = vmatmul.mubr.f32.gmra.mxu0 %v683
      %v1038 = vpop.f32.mrf.mxu0
      %v1039 = vadd.f32 0.0, %v1038
      %v1040 = vpop.f32.mrf.mxu0
      %1041 = vmatprep.mubr.f32.mxu0 0.0
      %1042 = vmatmul.mubr.f32.gmra.mxu0 %v686
      %v1043 = vpop.f32.mrf.mxu0
      %v1044 = vadd.f32 0.0, %v1043
      %v1045 = vpop.f32.mrf.mxu0
      %1046 = vmatprep.mubr.f32.mxu0 0.0
      %1047 = vmatmul.mubr.f32.gmra.mxu0 %v689
      %v1048 = vpop.f32.mrf.mxu0
      %v1049 = vadd.f32 0.0, %v1048
      %v1050 = vpop.f32.mrf.mxu0
      %1051 = vmatprep.mubr.f32.mxu0 0.0
      %1052 = vmatmul.mubr.f32.gmra.mxu0 %v692
      %v1053 = vpop.f32.mrf.mxu0
      %v1054 = vadd.f32 0.0, %v1053
      %v1055 = vpop.f32.mrf.mxu0
      %1056 = vmatprep.mubr.f32.mxu0 0.0
      %1057 = vmatmul.mubr.f32.gmra.mxu0 %v695
      %v1058 = vpop.f32.mrf.mxu0
      %v1059 = vadd.f32 0.0, %v1058
      %v1060 = vpop.f32.mrf.mxu0
      %1061 = vmatprep.mubr.f32.mxu0 0.0
      %1062 = vmatmul.mubr.f32.gmra.mxu0 %v698
      %v1063 = vpop.f32.mrf.mxu0
      %v1064 = vadd.f32 0.0, %v1063
      %v1065 = vpop.f32.mrf.mxu0
      %1066 = vmatprep.mubr.f32.mxu0 0.0
      %1067 = vmatmul.mubr.f32.gmra.mxu0 %v701
      %v1068 = vpop.f32.mrf.mxu0
      %v1069 = vadd.f32 0.0, %v1068
      %v1070 = vpop.f32.mrf.mxu0
      %1071 = vmatprep.mubr.f32.mxu0 0.0
      %1072 = vmatmul.mubr.f32.gmra.mxu0 %v704
      %v1073 = vpop.f32.mrf.mxu0
      %v1074 = vadd.f32 0.0, %v1073
      %v1075 = vpop.f32.mrf.mxu0
      %1076 = vmatprep.mubr.f32.mxu0 0.0
      %1077 = vmatmul.mubr.f32.gmra.mxu0 %v707
      %v1078 = vpop.f32.mrf.mxu0
      %v1079 = vadd.f32 0.0, %v1078
      %v1080 = vpop.f32.mrf.mxu0
      %1081 = vmatprep.mubr.f32.mxu0 0.0
      %1082 = vmatmul.mubr.f32.gmra.mxu0 %v710
      %v1083 = vpop.f32.mrf.mxu0
      %v1084 = vadd.f32 0.0, %v1083
      %v1085 = vpop.f32.mrf.mxu0
      %1086 = vmatprep.mubr.f32.mxu0 0.0
      %1087 = vmatmul.mubr.f32.gmra.mxu0 %v713
      %v1088 = vpop.f32.mrf.mxu0
      %v1089 = vadd.f32 0.0, %v1088
      %v1090 = vpop.f32.mrf.mxu0
      %1091 = vmatprep.mubr.f32.mxu0 0.0
      %1092 = vmatmul.mubr.f32.gmra.mxu0 %v716
      %v1093 = vpop.f32.mrf.mxu0
      %v1094 = vadd.f32 0.0, %v1093
      %v1095 = vpop.f32.mrf.mxu0
      %1096 = vmatprep.mubr.f32.mxu0 0.0
      %1097 = vmatmul.mubr.f32.gmra.mxu0 %v719
      %v1098 = vpop.f32.mrf.mxu0
      %v1099 = vadd.f32 0.0, %v1098
      %v1100 = vpop.f32.mrf.mxu0
      %1101 = vmatprep.mubr.f32.mxu0 0.0
      %1102 = vmatmul.mubr.f32.gmra.mxu0 %v722
      %v1103 = vpop.f32.mrf.mxu0
      %v1104 = vadd.f32 0.0, %v1103
      %v1105 = vpop.f32.mrf.mxu0
      %1106 = vmatprep.mubr.f32.mxu0 0.0
      %1107 = vmatmul.mubr.f32.gmra.mxu0 %v725
      %v1108 = vpop.f32.mrf.mxu0
      %v1109 = vadd.f32 0.0, %v1108
      %v1110 = vpop.f32.mrf.mxu0
      %1111 = vdwg.mxu0
      %vm1112 = vcmask 130048
      %1113 = vst.msk [vmem:[%s145] sm:$0xff] %vm1112, %v794
      %1114 = vst.msk [vmem:[%s145 + $0x8] sm:$0xff] %vm1112, %v799
      %1115 = vst.msk [vmem:[%s145 + $0x10] sm:$0xff] %vm1112, %v804
      %1116 = vst.msk [vmem:[%s145 + $0x18] sm:$0xff] %vm1112, %v809
      %1117 = vst.msk [vmem:[%s145 + $0x20] sm:$0xff] %vm1112, %v814
      %1118 = vst.msk [vmem:[%s145 + $0x28] sm:$0xff] %vm1112, %v819
      %1119 = vst.msk [vmem:[%s145 + $0x30] sm:$0xff] %vm1112, %v824
      %1120 = vst.msk [vmem:[%s145 + $0x38] sm:$0xff] %vm1112, %v829
      %1121 = vst.msk [vmem:[%s145 + $0x40] sm:$0xff] %vm1112, %v834
      %1122 = vst.msk [vmem:[%s145 + $0x48] sm:$0xff] %vm1112, %v839
      %1123 = vst.msk [vmem:[%s145 + $0x50] sm:$0xff] %vm1112, %v844
      %1124 = vst.msk [vmem:[%s145 + $0x58] sm:$0xff] %vm1112, %v849
      %1125 = vst.msk [vmem:[%s145 + $0x60] sm:$0xff] %vm1112, %v854
      %1126 = vst.msk [vmem:[%s145 + $0x68] sm:$0xff] %vm1112, %v859
      %1127 = vst.msk [vmem:[%s145 + $0x70] sm:$0xff] %vm1112, %v864
      %1128 = vst.msk [vmem:[%s145 + $0x78] sm:$0xff] %vm1112, %v869
      %1129 = vst.msk [vmem:[%s145 + $0x80] sm:$0xff] %vm1112, %v874
      %1130 = vst.msk [vmem:[%s145 + $0x88] sm:$0xff] %vm1112, %v879
      %1131 = vst.msk [vmem:[%s145 + $0x90] sm:$0xff] %vm1112, %v884
      %1132 = vst.msk [vmem:[%s145 + $0x98] sm:$0xff] %vm1112, %v889
      %1133 = vst.msk [vmem:[%s145 + $0xa0] sm:$0xff] %vm1112, %v894
      %1134 = vst.msk [vmem:[%s145 + $0xa8] sm:$0xff] %vm1112, %v899
      %1135 = vst.msk [vmem:[%s145 + $0xb0] sm:$0xff] %vm1112, %v904
      %1136 = vst.msk [vmem:[%s145 + $0xb8] sm:$0xff] %vm1112, %v909
      %1137 = vst.msk [vmem:[%s145 + $0xc0] sm:$0xff] %vm1112, %v914
      %1138 = vst.msk [vmem:[%s145 + $0xc8] sm:$0xff] %vm1112, %v919
      %1139 = vst.msk [vmem:[%s145 + $0xd0] sm:$0xff] %vm1112, %v924
      %1140 = vst.msk [vmem:[%s145 + $0xd8] sm:$0xff] %vm1112, %v929
      %1141 = vst.msk [vmem:[%s145 + $0xe0] sm:$0xff] %vm1112, %v934
      %1142 = vst.msk [vmem:[%s145 + $0xe8] sm:$0xff] %vm1112, %v939
      %1143 = vst.msk [vmem:[%s145 + $0xf0] sm:$0xff] %vm1112, %v944
      %1144 = vst.msk [vmem:[%s145 + $0xf8] sm:$0xff] %vm1112, %v949
      %1145 = vst.msk [vmem:[%s145 + $0x100] sm:$0xff] %vm1112, %v954
      %1146 = vst.msk [vmem:[%s145 + $0x108] sm:$0xff] %vm1112, %v959
      %1147 = vst.msk [vmem:[%s145 + $0x110] sm:$0xff] %vm1112, %v964
      %1148 = vst.msk [vmem:[%s145 + $0x118] sm:$0xff] %vm1112, %v969
      %1149 = vst.msk [vmem:[%s145 + $0x120] sm:$0xff] %vm1112, %v974
      %1150 = vst.msk [vmem:[%s145 + $0x128] sm:$0xff] %vm1112, %v979
      %1151 = vst.msk [vmem:[%s145 + $0x130] sm:$0xff] %vm1112, %v984
      %1152 = vst.msk [vmem:[%s145 + $0x138] sm:$0xff] %vm1112, %v989
      %1153 = vst.msk [vmem:[%s145 + $0x140] sm:$0xff] %vm1112, %v994
      %1154 = vst.msk [vmem:[%s145 + $0x148] sm:$0xff] %vm1112, %v999
      %1155 = vst.msk [vmem:[%s145 + $0x150] sm:$0xff] %vm1112, %v1004
      %1156 = vst.msk [vmem:[%s145 + $0x158] sm:$0xff] %vm1112, %v1009
      %1157 = vst.msk [vmem:[%s145 + $0x160] sm:$0xff] %vm1112, %v1014
      %1158 = vst.msk [vmem:[%s145 + $0x168] sm:$0xff] %vm1112, %v1019
      %1159 = vst.msk [vmem:[%s145 + $0x170] sm:$0xff] %vm1112, %v1024
      %1160 = vst.msk [vmem:[%s145 + $0x178] sm:$0xff] %vm1112, %v1029
      %1161 = vst.msk [vmem:[%s145 + $0x180] sm:$0xff] %vm1112, %v1034
      %1162 = vst.msk [vmem:[%s145 + $0x188] sm:$0xff] %vm1112, %v1039
      %1163 = vst.msk [vmem:[%s145 + $0x190] sm:$0xff] %vm1112, %v1044
      %1164 = vst.msk [vmem:[%s145 + $0x198] sm:$0xff] %vm1112, %v1049
      %1165 = vst.msk [vmem:[%s145 + $0x1a0] sm:$0xff] %vm1112, %v1054
      %1166 = vst.msk [vmem:[%s145 + $0x1a8] sm:$0xff] %vm1112, %v1059
      %1167 = vst.msk [vmem:[%s145 + $0x1b0] sm:$0xff] %vm1112, %v1064
      %1168 = vst.msk [vmem:[%s145 + $0x1b8] sm:$0xff] %vm1112, %v1069
      %1169 = vst.msk [vmem:[%s145 + $0x1c0] sm:$0xff] %vm1112, %v1074
      %1170 = vst.msk [vmem:[%s145 + $0x1c8] sm:$0xff] %vm1112, %v1079
      %1171 = vst.msk [vmem:[%s145 + $0x1d0] sm:$0xff] %vm1112, %v1084
      %1172 = vst.msk [vmem:[%s145 + $0x1d8] sm:$0xff] %vm1112, %v1089
      %1173 = vst.msk [vmem:[%s145 + $0x1e0] sm:$0xff] %vm1112, %v1094
      %1174 = vst.msk [vmem:[%s145 + $0x1e8] sm:$0xff] %vm1112, %v1099
      %1175 = vst.msk [vmem:[%s145 + $0x1f0] sm:$0xff] %vm1112, %v1104
      %1176 = vst.msk [vmem:[%s145 + $0x1f8] sm:$0xff] %vm1112, %v1109
      %s1177 = smul.u32 64, %s13
      %p1178 = scmp.lt.s32.totalorder %s1177, 191
      %s1179 = scalar_select %p1178, %s1177, 191
      %s1180 = smul.addr %s1179, 8
      %s1181 = scalar_lea.vmem %s2, %s1180
      // Predicated region
      $region29: #{tpu_custom_call.1} parent=27 // pred_check
        %p1182 = pneg %p78
      $region30: #{tpu_custom_call.1} parent=27 // pred_check_branch
        %1184 = sbr.rel (%p1182) target = $region32
      $region31: #{tpu_custom_call.1} parent=27 // pred_region
        %s1185 = smul.u32 64, %s13
      $region32: #{tpu_custom_call.1} parent=27 // pred_fallthru
        _
    $region28: #{tpu_custom_call.1} parent=5 // pred_fallthru
      _
    %p1186 = scmp.le.s32.totalorder 2, %s8
    // Predicated region
    $region33: #{tpu_custom_call.1} parent=5 // pred_check
      %p1187 = pneg %p1186
    $region34: #{tpu_custom_call.1} parent=5 // pred_check_branch
      %1189 = sbr.rel (%p1187) target = $region36
    $region35: #{tpu_custom_call.1} parent=5 // pred_region
      %s1190 = ssub.s32 %s8, 2
      // Predicated region
      $region37: #{tpu_custom_call.1} parent=35 // pred_check
        %p1191 = pneg %p84
      $region38: #{tpu_custom_call.1} parent=35 // pred_check_branch
        %1193 = sbr.rel (%p1191) target = $region40
      $region39: #{tpu_custom_call.1} parent=35 // pred_region
        %s1194 = smul.u32 64, %s14
        %p1195 = scmp.lt.s32.totalorder %s1194, 191
        %s1196 = scalar_select %p1195, %s1194, 191
        %s1197 = smul.addr %s1196, 8
        %s1198 = scalar_lea.vmem %s2, %s1197
      $region40: #{tpu_custom_call.1} parent=35 // pred_fallthru
        _
    $region36: #{tpu_custom_call.1} parent=5 // pred_fallthru
      _
  $region6: #{tpu_custom_call.1} parent=0 // loop_footer
    %s12 = sadd.s32 1, %s8
  $region7: #{tpu_custom_call.1} parent=0 // loop_footer_branch
    %7 = sbr.rel target = $region3
  $region8: #{tpu_custom_call.1} parent=0 // loop_exit
    _

</llo_original>
